<compile_context>
chip_gen: v7x
topology: tpu7x:2x2x1
jax: 0.10.0
libtpu: 0.0.40
codegen_flags: <defaults>
</compile_context>

<pallas_src>
import functools
import math

import jax
import jax.numpy as jnp
from jax import lax
from jax.experimental import pallas as pl
from jax.experimental.pallas import tpu as pltpu


def _rotation_kernel(cs_ref, xc_ref, yc_ref, img_ref, out_ref, *, height):
    """One (view-group, pixel-tile) grid step.

    cs_ref : SMEM (2*Nv,) f32      -- interleaved [cos, sin] per view.
    xc_ref : VMEM (1, TP) f32      -- centered output-x coordinate per output pixel.
    yc_ref : VMEM (1, TP) f32      -- centered output-y coordinate per output pixel.
    img_ref: VMEM (VB, B*H, W)     -- source images of this view group (natural layout).
    out_ref: VMEM (VB, B, TP)      -- rotated pixels, lane-dense (pixels in lanes).
    """
    vg = pl.program_id(0)
    VB, BH, W = img_ref.shape
    H = height
    B = BH // H
    TP = xc_ref.shape[1]
    cx = (W - 1) / 2.0
    cy = (H - 1) / 2.0

    X = xc_ref[...]                                            # (1, TP)
    Y = yc_ref[...]                                            # (1, TP)

    # Hoisted iotas (JAX does not CSE broadcast_in_dim inside the view loop).
    rows = lax.broadcasted_iota(jnp.int32, (H, TP), 0).astype(jnp.float32)
    cols = lax.broadcasted_iota(jnp.int32, (W, TP), 0).astype(jnp.float32)

    for vv in range(VB):                       # VB static & small -> unrolled
        v = vg * VB + vv
        ca = cs_ref[2 * v]
        sa = cs_ref[2 * v + 1]

        # Inverse map: output pixel -> source coordinates.
        src_x = ca * X - sa * Y + cx                           # (1, TP)
        src_y = sa * X + ca * Y + cy                           # (1, TP)

        # Separable bilinear "tent" weights; out-of-range taps get weight 0,
        # matching zero-fill padding. Output pixels stay in lanes end-to-end.
        bx_t = jnp.maximum(0.0, 1.0 - jnp.abs(cols - src_x))   # (W, TP)
        ay_t = jnp.maximum(0.0, 1.0 - jnp.abs(rows - src_y))   # (H, TP)

        # Single MXU matmul with B fused into the M dimension, then VPU
        # row-weighting and a sublane reduce over H. Result is lane-dense.
        u = jnp.dot(img_ref[vv], bx_t,
                    preferred_element_type=jnp.float32)        # (B*H, TP)
        u = u.reshape(B, H, TP) * ay_t[None]                   # (B, H, TP)
        out_ref[vv] = jnp.sum(u, axis=1).astype(out_ref.dtype)  # (B, TP)


def _round_up(n, m):
    return ((n + m - 1) // m) * m


def _choose_tiling(B, Nv, H, W, P,
                   temp_budget=10 << 20, block_budget=12 << 20):
    """Pick (TP, VB, P_pad): pixel tile, views per step, padded pixel count."""
    # In-kernel temporaries per lane column: iotas (H+W), weights (H+W),
    # matmul result + weighted product (2*B*H), plus slack.
    per_lane_bytes = (2 * (W + H) + 2 * B * H + 8) * 4
    tp_max = max(128, (temp_budget // per_lane_bytes) // 128 * 128)
    TP = min(_round_up(P, 128), tp_max)
    P_pad = _round_up(P, TP)

    # Views per grid step: amortize per-step overhead on small images while
    # keeping the double-buffered image + output blocks within budget.
    desired = min(16, max(1, 8192 // max(1, B * P)))
    VB = 1
    for d in range(min(Nv, desired), 0, -1):
        if Nv % d:
            continue
        if 2 * d * B * (H * W + TP) * 4 <= block_budget:
            VB = d
            break
    return TP, VB, P_pad


def rotation_forward(x, dAng, height, width):
    """x: (B, N2, Nv, 1) float32, dAng in radians. Returns (B, Nv, N2, 1)."""
    B, N2, Nv, L = x.shape
    H, W = height, width
    assert L == 1 and N2 == H * W
    P = N2

    # y[b, v, h, w] = x[b, h*W + w, v, 0]; keep images in natural row-major
    # (Nv, B*H, W) layout (single wrapper transpose, free trailing reshape).
    imgs = jnp.transpose(x[..., 0], (2, 0, 1)).reshape(Nv, B * H, W)

    # Effective rotation of view v is dAng * v radians; flat interleaved SMEM.
    angles = dAng * jnp.arange(Nv, dtype=jnp.float32)
    cos_sin = jnp.stack([jnp.cos(angles), jnp.sin(angles)], axis=-1).reshape(-1)

    # Centered output-pixel coordinates shared by all views (tiny).
    oy, ox = jnp.meshgrid(jnp.arange(H, dtype=jnp.float32),
                          jnp.arange(W, dtype=jnp.float32), indexing="ij")
    xc = (ox - (W - 1) / 2.0).reshape(1, P)
    yc = (oy - (H - 1) / 2.0).reshape(1, P)

    TP, VB, P_pad = _choose_tiling(B, Nv, H, W, P)
    if P_pad != P:
        pad = P_pad - P
        xc = jnp.pad(xc, ((0, 0), (0, pad)))
        yc = jnp.pad(yc, ((0, 0), (0, pad)))
    n_tiles = P_pad // TP

    kernel = functools.partial(_rotation_kernel, height=H)

    out = pl.pallas_call(
        kernel,
        out_shape=jax.ShapeDtypeStruct((Nv, B, P_pad), x.dtype),
        grid=(Nv // VB, n_tiles),
        in_specs=[
            pl.BlockSpec(memory_space=pltpu.MemorySpace.SMEM),        # cos/sin
            pl.BlockSpec((1, TP), lambda vg, t: (0, t)),              # xc
            pl.BlockSpec((1, TP), lambda vg, t: (0, t)),              # yc
            pl.BlockSpec((VB, B * H, W), lambda vg, t: (vg, 0, 0)),   # images (once per view group)
        ],
        out_specs=pl.BlockSpec((VB, B, TP), lambda vg, t: (vg, 0, t)),
        compiler_params=pltpu.CompilerParams(
            dimension_semantics=("parallel", "arbitrary"),
            vmem_limit_bytes=40 << 20),
    )(cos_sin, xc, yc, imgs)

    if P_pad != P:
        out = out[:, :, :P]
    # (Nv, B, P) -> (B, Nv, N2, 1), matching the PyTorch module's output layout.
    return jnp.transpose(out, (1, 0, 2)).reshape(B, Nv, N2, 1)


def _rotation_reference(x, dAng, height, width):
    """Pure-JAX 4-tap bilinear gather with the same rotation convention."""
    B, N2, Nv, _ = x.shape
    H, W = height, width
    y = jnp.transpose(x[..., 0], (0, 2, 1)).reshape(B, Nv, H, W)
    angles = dAng * jnp.arange(Nv, dtype=jnp.float32)
    oy, ox = jnp.meshgrid(jnp.arange(H, dtype=jnp.float32),
                          jnp.arange(W, dtype=jnp.float32), indexing="ij")
    cx = (W - 1) / 2.0
    cy = (H - 1) / 2.0
    X = (ox - cx).reshape(-1)
    Y = (oy - cy).reshape(-1)
    ca = jnp.cos(angles)[:, None]
    sa = jnp.sin(angles)[:, None]
    sx = ca * X[None] - sa * Y[None] + cx
    sy = sa * X[None] + ca * Y[None] + cy
    x0 = jnp.floor(sx)
    y0 = jnp.floor(sy)
    fx = sx - x0
    fy = sy - y0
    vidx = jnp.arange(Nv)[:, None]
    out = jnp.zeros((B, Nv, N2), jnp.float32)
    for dy in (0, 1):
        for dx in (0, 1):
            yy = y0 + dy
            xx = x0 + dx
            wgt = (fy if dy else (1.0 - fy)) * (fx if dx else (1.0 - fx))
            inb = (yy >= 0) & (yy < H) & (xx >= 0) & (xx < W)
            yi = jnp.clip(yy, 0, H - 1).astype(jnp.int32)
            xi = jnp.clip(xx, 0, W - 1).astype(jnp.int32)
            vals = y[:, vidx, yi, xi]                     # (B, Nv, P)
            out = out + jnp.where(inb, wgt, 0.0)[None] * vals
    return out.reshape(B, Nv, N2, 1)


if __name__ == "__main__":
    key = jax.random.PRNGKey(0)
    B, Nv, H, W = 2, 8, 16, 16
    N2 = H * W
    dAng = math.pi / 8.0                       # radians, as the module receives it

    x = jax.random.normal(key, (B, N2, Nv, 1), dtype=jnp.float32)

    out = jax.block_until_ready(rotation_forward(x, dAng, H, W))

    assert out.shape == (B, Nv, N2, 1), out.shape
    assert bool(jnp.all(jnp.isfinite(out)))
    # View 0 (0 degrees) is a pure relayout of the input.
    assert jnp.allclose(out[:, 0, :, 0], x[:, :, 0, 0], atol=1e-5)
    # Full bilinear-rotation check against a pure-JAX gather reference.
    ref = _rotation_reference(x, dAng, H, W)
    assert jnp.allclose(out, ref, atol=1e-4, rtol=1e-4), \
        float(jnp.max(jnp.abs(out - ref)))
    print("KERNEL_OK")
</pallas_src>

<mosaic_0001>
module attributes {stable_mosaic.version = 11 : i64} {
  func.func @_rotation_kernel(%arg0: i32, %arg1: i32, %arg2: memref<16xf32, #tpu.memory_space<smem>>, %arg3: memref<1x256xf32, #tpu.memory_space<vmem>>, %arg4: memref<1x256xf32, #tpu.memory_space<vmem>>, %arg5: memref<8x32x16xf32, #tpu.memory_space<vmem>>, %arg6: memref<8x2x256xf32, #tpu.memory_space<vmem>>) attributes {dimension_semantics = [#tpu.dimension_semantics<parallel>, #tpu.dimension_semantics<arbitrary>], iteration_bounds = array<i64: 1, 1>, scalar_prefetch = 0 : i64, scratch_operands = 0 : i64, tpu.core_type = #tpu.core_type<tc>, window_params = [{transform_indices = @transform_0, window_bounds = array<i64: 16>}, {transform_indices = @transform_1, window_bounds = array<i64: 1, 256>}, {transform_indices = @transform_2, window_bounds = array<i64: 1, 256>}, {transform_indices = @transform_3, window_bounds = array<i64: 8, 32, 16>}, {transform_indices = @transform_4, window_bounds = array<i64: 8, 2, 256>}]} {
    %c0 = arith.constant 0 : index
    %c0_0 = arith.constant 0 : index
    %0 = vector.load %arg3[%c0, %c0_0] : memref<1x256xf32, #tpu.memory_space<vmem>>, vector<1x256xf32>
    %c0_1 = arith.constant 0 : index
    %c0_2 = arith.constant 0 : index
    %1 = vector.load %arg4[%c0_1, %c0_2] : memref<1x256xf32, #tpu.memory_space<vmem>>, vector<1x256xf32>
    %2 = tpu.iota {dimensions = array<i32: 0>} : vector<16x256xi32>
    %3 = arith.sitofp %2 : vector<16x256xi32> to vector<16x256xf32>
    %4 = tpu.iota {dimensions = array<i32: 0>} : vector<16x256xi32>
    %5 = arith.sitofp %4 : vector<16x256xi32> to vector<16x256xf32>
    %c8_i32 = arith.constant 8 : i32
    %6 = arith.muli %arg0, %c8_i32 : i32
    %c0_i32 = arith.constant 0 : i32
    %7 = arith.addi %6, %c0_i32 : i32
    %c2_i32 = arith.constant 2 : i32
    %8 = arith.muli %c2_i32, %7 : i32
    %9 = arith.index_cast %8 : i32 to index
    %10 = memref.load %arg2[%9] : memref<16xf32, #tpu.memory_space<smem>>
    %c2_i32_3 = arith.constant 2 : i32
    %11 = arith.muli %c2_i32_3, %7 : i32
    %c1_i32 = arith.constant 1 : i32
    %12 = arith.addi %11, %c1_i32 : i32
    %13 = arith.index_cast %12 : i32 to index
    %14 = memref.load %arg2[%13] : memref<16xf32, #tpu.memory_space<smem>>
    %15 = vector.broadcast %10 : f32 to vector<1x256xf32>
    %16 = arith.mulf %15, %0 : vector<1x256xf32>
    %17 = vector.broadcast %14 : f32 to vector<1x256xf32>
    %18 = arith.mulf %17, %1 : vector<1x256xf32>
    %19 = arith.subf %16, %18 : vector<1x256xf32>
    %cst = arith.constant 7.500000e+00 : f32
    %20 = vector.broadcast %cst : f32 to vector<1x256xf32>
    %21 = arith.addf %19, %20 : vector<1x256xf32>
    %22 = vector.broadcast %14 : f32 to vector<1x256xf32>
    %23 = arith.mulf %22, %0 : vector<1x256xf32>
    %24 = vector.broadcast %10 : f32 to vector<1x256xf32>
    %25 = arith.mulf %24, %1 : vector<1x256xf32>
    %26 = arith.addf %23, %25 : vector<1x256xf32>
    %cst_4 = arith.constant 7.500000e+00 : f32
    %27 = vector.broadcast %cst_4 : f32 to vector<1x256xf32>
    %28 = arith.addf %26, %27 : vector<1x256xf32>
    %29 = vector.broadcast %21 : vector<1x256xf32> to vector<16x256xf32>
    %30 = arith.subf %5, %29 : vector<16x256xf32>
    %31 = math.absf %30 : vector<16x256xf32>
    %cst_5 = arith.constant 1.000000e+00 : f32
    %32 = vector.broadcast %cst_5 : f32 to vector<16x256xf32>
    %33 = arith.subf %32, %31 : vector<16x256xf32>
    %cst_6 = arith.constant 0.000000e+00 : f32
    %34 = vector.broadcast %cst_6 : f32 to vector<16x256xf32>
    %35 = arith.maximumf %34, %33 : vector<16x256xf32>
    %36 = vector.broadcast %28 : vector<1x256xf32> to vector<16x256xf32>
    %37 = arith.subf %3, %36 : vector<16x256xf32>
    %38 = math.absf %37 : vector<16x256xf32>
    %cst_7 = arith.constant 1.000000e+00 : f32
    %39 = vector.broadcast %cst_7 : f32 to vector<16x256xf32>
    %40 = arith.subf %39, %38 : vector<16x256xf32>
    %cst_8 = arith.constant 0.000000e+00 : f32
    %41 = vector.broadcast %cst_8 : f32 to vector<16x256xf32>
    %42 = arith.maximumf %41, %40 : vector<16x256xf32>
    %c0_9 = arith.constant 0 : index
    %c0_10 = arith.constant 0 : index
    %c0_11 = arith.constant 0 : index
    %43 = vector.load %arg5[%c0_9, %c0_10, %c0_11] : memref<8x32x16xf32, #tpu.memory_space<vmem>>, vector<1x32x16xf32>
    %44 = vector.shape_cast %43 : vector<1x32x16xf32> to vector<32x16xf32>
    %cst_12 = arith.constant dense<0.000000e+00> : vector<32x256xf32>
    %45 = tpu.matmul %44, %35, %cst_12 {dimension_numbers = #tpu.dot_dimension_numbers<[1], [0], [0], [1], [0, 0, 1, 1], [], []>} : vector<32x16xf32>, vector<16x256xf32>, vector<32x256xf32> -> vector<32x256xf32>
    %46 = vector.shape_cast %45 : vector<32x256xf32> to vector<2x16x256xf32>
    %47 = vector.shape_cast %42 : vector<16x256xf32> to vector<1x16x256xf32>
    %48 = vector.broadcast %47 : vector<1x16x256xf32> to vector<2x16x256xf32>
    %49 = arith.mulf %46, %48 : vector<2x16x256xf32>
    %cst_13 = arith.constant dense<0.000000e+00> : vector<2x256xf32>
    %50 = vector.multi_reduction <add>, %49, %cst_13 [1] : vector<2x16x256xf32> to vector<2x256xf32>
    %c0_14 = arith.constant 0 : index
    %c0_15 = arith.constant 0 : index
    %c0_16 = arith.constant 0 : index
    %51 = vector.load %arg6[%c0_14, %c0_15, %c0_16] : memref<8x2x256xf32, #tpu.memory_space<vmem>>, vector<1x2x256xf32>
    %52 = vector.shape_cast %51 : vector<1x2x256xf32> to vector<2x256xf32>
    %53 = vector.shape_cast %50 : vector<2x256xf32> to vector<1x2x256xf32>
    tpu.vector_store %arg6[%c0_14, %c0_15, %c0_16], %53 {strides = array<i32>} : memref<8x2x256xf32, #tpu.memory_space<vmem>>, vector<1x2x256xf32>,
    %c8_i32_17 = arith.constant 8 : i32
    %54 = arith.muli %arg0, %c8_i32_17 : i32
    %c1_i32_18 = arith.constant 1 : i32
    %55 = arith.addi %54, %c1_i32_18 : i32
    %c2_i32_19 = arith.constant 2 : i32
    %56 = arith.muli %c2_i32_19, %55 : i32
    %57 = arith.index_cast %56 : i32 to index
    %58 = memref.load %arg2[%57] : memref<16xf32, #tpu.memory_space<smem>>
    %c2_i32_20 = arith.constant 2 : i32
    %59 = arith.muli %c2_i32_20, %55 : i32
    %c1_i32_21 = arith.constant 1 : i32
    %60 = arith.addi %59, %c1_i32_21 : i32
    %61 = arith.index_cast %60 : i32 to index
    %62 = memref.load %arg2[%61] : memref<16xf32, #tpu.memory_space<smem>>
    %63 = vector.broadcast %58 : f32 to vector<1x256xf32>
    %64 = arith.mulf %63, %0 : vector<1x256xf32>
    %65 = vector.broadcast %62 : f32 to vector<1x256xf32>
    %66 = arith.mulf %65, %1 : vector<1x256xf32>
    %67 = arith.subf %64, %66 : vector<1x256xf32>
    %cst_22 = arith.constant 7.500000e+00 : f32
    %68 = vector.broadcast %cst_22 : f32 to vector<1x256xf32>
    %69 = arith.addf %67, %68 : vector<1x256xf32>
    %70 = vector.broadcast %62 : f32 to vector<1x256xf32>
    %71 = arith.mulf %70, %0 : vector<1x256xf32>
    %72 = vector.broadcast %58 : f32 to vector<1x256xf32>
    %73 = arith.mulf %72, %1 : vector<1x256xf32>
    %74 = arith.addf %71, %73 : vector<1x256xf32>
    %cst_23 = arith.constant 7.500000e+00 : f32
    %75 = vector.broadcast %cst_23 : f32 to vector<1x256xf32>
    %76 = arith.addf %74, %75 : vector<1x256xf32>
    %77 = vector.broadcast %69 : vector<1x256xf32> to vector<16x256xf32>
    %78 = arith.subf %5, %77 : vector<16x256xf32>
    %79 = math.absf %78 : vector<16x256xf32>
    %cst_24 = arith.constant 1.000000e+00 : f32
    %80 = vector.broadcast %cst_24 : f32 to vector<16x256xf32>
    %81 = arith.subf %80, %79 : vector<16x256xf32>
    %cst_25 = arith.constant 0.000000e+00 : f32
    %82 = vector.broadcast %cst_25 : f32 to vector<16x256xf32>
    %83 = arith.maximumf %82, %81 : vector<16x256xf32>
    %84 = vector.broadcast %76 : vector<1x256xf32> to vector<16x256xf32>
    %85 = arith.subf %3, %84 : vector<16x256xf32>
    %86 = math.absf %85 : vector<16x256xf32>
    %cst_26 = arith.constant 1.000000e+00 : f32
    %87 = vector.broadcast %cst_26 : f32 to vector<16x256xf32>
    %88 = arith.subf %87, %86 : vector<16x256xf32>
    %cst_27 = arith.constant 0.000000e+00 : f32
    %89 = vector.broadcast %cst_27 : f32 to vector<16x256xf32>
    %90 = arith.maximumf %89, %88 : vector<16x256xf32>
    %c1 = arith.constant 1 : index
    %c0_28 = arith.constant 0 : index
    %c0_29 = arith.constant 0 : index
    %91 = vector.load %arg5[%c1, %c0_28, %c0_29] : memref<8x32x16xf32, #tpu.memory_space<vmem>>, vector<1x32x16xf32>
    %92 = vector.shape_cast %91 : vector<1x32x16xf32> to vector<32x16xf32>
    %cst_30 = arith.constant dense<0.000000e+00> : vector<32x256xf32>
    %93 = tpu.matmul %92, %83, %cst_30 {dimension_numbers = #tpu.dot_dimension_numbers<[1], [0], [0], [1], [0, 0, 1, 1], [], []>} : vector<32x16xf32>, vector<16x256xf32>, vector<32x256xf32> -> vector<32x256xf32>
    %94 = vector.shape_cast %93 : vector<32x256xf32> to vector<2x16x256xf32>
    %95 = vector.shape_cast %90 : vector<16x256xf32> to vector<1x16x256xf32>
    %96 = vector.broadcast %95 : vector<1x16x256xf32> to vector<2x16x256xf32>
    %97 = arith.mulf %94, %96 : vector<2x16x256xf32>
    %cst_31 = arith.constant dense<0.000000e+00> : vector<2x256xf32>
    %98 = vector.multi_reduction <add>, %97, %cst_31 [1] : vector<2x16x256xf32> to vector<2x256xf32>
    %c1_32 = arith.constant 1 : index
    %c0_33 = arith.constant 0 : index
    %c0_34 = arith.constant 0 : index
    %99 = vector.load %arg6[%c1_32, %c0_33, %c0_34] : memref<8x2x256xf32, #tpu.memory_space<vmem>>, vector<1x2x256xf32>
    %100 = vector.shape_cast %99 : vector<1x2x256xf32> to vector<2x256xf32>
    %101 = vector.shape_cast %98 : vector<2x256xf32> to vector<1x2x256xf32>
    tpu.vector_store %arg6[%c1_32, %c0_33, %c0_34], %101 {strides = array<i32>} : memref<8x2x256xf32, #tpu.memory_space<vmem>>, vector<1x2x256xf32>,
    %c8_i32_35 = arith.constant 8 : i32
    %102 = arith.muli %arg0, %c8_i32_35 : i32
    %c2_i32_36 = arith.constant 2 : i32
    %103 = arith.addi %102, %c2_i32_36 : i32
    %c2_i32_37 = arith.constant 2 : i32
    %104 = arith.muli %c2_i32_37, %103 : i32
    %105 = arith.index_cast %104 : i32 to index
    %106 = memref.load %arg2[%105] : memref<16xf32, #tpu.memory_space<smem>>
    %c2_i32_38 = arith.constant 2 : i32
    %107 = arith.muli %c2_i32_38, %103 : i32
    %c1_i32_39 = arith.constant 1 : i32
    %108 = arith.addi %107, %c1_i32_39 : i32
    %109 = arith.index_cast %108 : i32 to index
    %110 = memref.load %arg2[%109] : memref<16xf32, #tpu.memory_space<smem>>
    %111 = vector.broadcast %106 : f32 to vector<1x256xf32>
    %112 = arith.mulf %111, %0 : vector<1x256xf32>
    %113 = vector.broadcast %110 : f32 to vector<1x256xf32>
    %114 = arith.mulf %113, %1 : vector<1x256xf32>
    %115 = arith.subf %112, %114 : vector<1x256xf32>
    %cst_40 = arith.constant 7.500000e+00 : f32
    %116 = vector.broadcast %cst_40 : f32 to vector<1x256xf32>
    %117 = arith.addf %115, %116 : vector<1x256xf32>
    %118 = vector.broadcast %110 : f32 to vector<1x256xf32>
    %119 = arith.mulf %118, %0 : vector<1x256xf32>
    %120 = vector.broadcast %106 : f32 to vector<1x256xf32>
    %121 = arith.mulf %120, %1 : vector<1x256xf32>
    %122 = arith.addf %119, %121 : vector<1x256xf32>
    %cst_41 = arith.constant 7.500000e+00 : f32
    %123 = vector.broadcast %cst_41 : f32 to vector<1x256xf32>
    %124 = arith.addf %122, %123 : vector<1x256xf32>
    %125 = vector.broadcast %117 : vector<1x256xf32> to vector<16x256xf32>
    %126 = arith.subf %5, %125 : vector<16x256xf32>
    %127 = math.absf %126 : vector<16x256xf32>
    %cst_42 = arith.constant 1.000000e+00 : f32
    %128 = vector.broadcast %cst_42 : f32 to vector<16x256xf32>
    %129 = arith.subf %128, %127 : vector<16x256xf32>
    %cst_43 = arith.constant 0.000000e+00 : f32
    %130 = vector.broadcast %cst_43 : f32 to vector<16x256xf32>
    %131 = arith.maximumf %130, %129 : vector<16x256xf32>
    %132 = vector.broadcast %124 : vector<1x256xf32> to vector<16x256xf32>
    %133 = arith.subf %3, %132 : vector<16x256xf32>
    %134 = math.absf %133 : vector<16x256xf32>
    %cst_44 = arith.constant 1.000000e+00 : f32
    %135 = vector.broadcast %cst_44 : f32 to vector<16x256xf32>
    %136 = arith.subf %135, %134 : vector<16x256xf32>
    %cst_45 = arith.constant 0.000000e+00 : f32
    %137 = vector.broadcast %cst_45 : f32 to vector<16x256xf32>
    %138 = arith.maximumf %137, %136 : vector<16x256xf32>
    %c2 = arith.constant 2 : index
    %c0_46 = arith.constant 0 : index
    %c0_47 = arith.constant 0 : index
    %139 = vector.load %arg5[%c2, %c0_46, %c0_47] : memref<8x32x16xf32, #tpu.memory_space<vmem>>, vector<1x32x16xf32>
    %140 = vector.shape_cast %139 : vector<1x32x16xf32> to vector<32x16xf32>
    %cst_48 = arith.constant dense<0.000000e+00> : vector<32x256xf32>
    %141 = tpu.matmul %140, %131, %cst_48 {dimension_numbers = #tpu.dot_dimension_numbers<[1], [0], [0], [1], [0, 0, 1, 1], [], []>} : vector<32x16xf32>, vector<16x256xf32>, vector<32x256xf32> -> vector<32x256xf32>
    %142 = vector.shape_cast %141 : vector<32x256xf32> to vector<2x16x256xf32>
    %143 = vector.shape_cast %138 : vector<16x256xf32> to vector<1x16x256xf32>
    %144 = vector.broadcast %143 : vector<1x16x256xf32> to vector<2x16x256xf32>
    %145 = arith.mulf %142, %144 : vector<2x16x256xf32>
    %cst_49 = arith.constant dense<0.000000e+00> : vector<2x256xf32>
    %146 = vector.multi_reduction <add>, %145, %cst_49 [1] : vector<2x16x256xf32> to vector<2x256xf32>
    %c2_50 = arith.constant 2 : index
    %c0_51 = arith.constant 0 : index
    %c0_52 = arith.constant 0 : index
    %147 = vector.load %arg6[%c2_50, %c0_51, %c0_52] : memref<8x2x256xf32, #tpu.memory_space<vmem>>, vector<1x2x256xf32>
    %148 = vector.shape_cast %147 : vector<1x2x256xf32> to vector<2x256xf32>
    %149 = vector.shape_cast %146 : vector<2x256xf32> to vector<1x2x256xf32>
    tpu.vector_store %arg6[%c2_50, %c0_51, %c0_52], %149 {strides = array<i32>} : memref<8x2x256xf32, #tpu.memory_space<vmem>>, vector<1x2x256xf32>,
    %c8_i32_53 = arith.constant 8 : i32
    %150 = arith.muli %arg0, %c8_i32_53 : i32
    %c3_i32 = arith.constant 3 : i32
    %151 = arith.addi %150, %c3_i32 : i32
    %c2_i32_54 = arith.constant 2 : i32
    %152 = arith.muli %c2_i32_54, %151 : i32
    %153 = arith.index_cast %152 : i32 to index
    %154 = memref.load %arg2[%153] : memref<16xf32, #tpu.memory_space<smem>>
    %c2_i32_55 = arith.constant 2 : i32
    %155 = arith.muli %c2_i32_55, %151 : i32
    %c1_i32_56 = arith.constant 1 : i32
    %156 = arith.addi %155, %c1_i32_56 : i32
    %157 = arith.index_cast %156 : i32 to index
    %158 = memref.load %arg2[%157] : memref<16xf32, #tpu.memory_space<smem>>
    %159 = vector.broadcast %154 : f32 to vector<1x256xf32>
    %160 = arith.mulf %159, %0 : vector<1x256xf32>
    %161 = vector.broadcast %158 : f32 to vector<1x256xf32>
    %162 = arith.mulf %161, %1 : vector<1x256xf32>
    %163 = arith.subf %160, %162 : vector<1x256xf32>
    %cst_57 = arith.constant 7.500000e+00 : f32
    %164 = vector.broadcast %cst_57 : f32 to vector<1x256xf32>
    %165 = arith.addf %163, %164 : vector<1x256xf32>
    %166 = vector.broadcast %158 : f32 to vector<1x256xf32>
    %167 = arith.mulf %166, %0 : vector<1x256xf32>
    %168 = vector.broadcast %154 : f32 to vector<1x256xf32>
    %169 = arith.mulf %168, %1 : vector<1x256xf32>
    %170 = arith.addf %167, %169 : vector<1x256xf32>
    %cst_58 = arith.constant 7.500000e+00 : f32
    %171 = vector.broadcast %cst_58 : f32 to vector<1x256xf32>
    %172 = arith.addf %170, %171 : vector<1x256xf32>
    %173 = vector.broadcast %165 : vector<1x256xf32> to vector<16x256xf32>
    %174 = arith.subf %5, %173 : vector<16x256xf32>
    %175 = math.absf %174 : vector<16x256xf32>
    %cst_59 = arith.constant 1.000000e+00 : f32
    %176 = vector.broadcast %cst_59 : f32 to vector<16x256xf32>
    %177 = arith.subf %176, %175 : vector<16x256xf32>
    %cst_60 = arith.constant 0.000000e+00 : f32
    %178 = vector.broadcast %cst_60 : f32 to vector<16x256xf32>
    %179 = arith.maximumf %178, %177 : vector<16x256xf32>
    %180 = vector.broadcast %172 : vector<1x256xf32> to vector<16x256xf32>
    %181 = arith.subf %3, %180 : vector<16x256xf32>
    %182 = math.absf %181 : vector<16x256xf32>
    %cst_61 = arith.constant 1.000000e+00 : f32
    %183 = vector.broadcast %cst_61 : f32 to vector<16x256xf32>
    %184 = arith.subf %183, %182 : vector<16x256xf32>
    %cst_62 = arith.constant 0.000000e+00 : f32
    %185 = vector.broadcast %cst_62 : f32 to vector<16x256xf32>
    %186 = arith.maximumf %185, %184 : vector<16x256xf32>
    %c3 = arith.constant 3 : index
    %c0_63 = arith.constant 0 : index
    %c0_64 = arith.constant 0 : index
    %187 = vector.load %arg5[%c3, %c0_63, %c0_64] : memref<8x32x16xf32, #tpu.memory_space<vmem>>, vector<1x32x16xf32>
    %188 = vector.shape_cast %187 : vector<1x32x16xf32> to vector<32x16xf32>
    %cst_65 = arith.constant dense<0.000000e+00> : vector<32x256xf32>
    %189 = tpu.matmul %188, %179, %cst_65 {dimension_numbers = #tpu.dot_dimension_numbers<[1], [0], [0], [1], [0, 0, 1, 1], [], []>} : vector<32x16xf32>, vector<16x256xf32>, vector<32x256xf32> -> vector<32x256xf32>
    %190 = vector.shape_cast %189 : vector<32x256xf32> to vector<2x16x256xf32>
    %191 = vector.shape_cast %186 : vector<16x256xf32> to vector<1x16x256xf32>
    %192 = vector.broadcast %191 : vector<1x16x256xf32> to vector<2x16x256xf32>
    %193 = arith.mulf %190, %192 : vector<2x16x256xf32>
    %cst_66 = arith.constant dense<0.000000e+00> : vector<2x256xf32>
    %194 = vector.multi_reduction <add>, %193, %cst_66 [1] : vector<2x16x256xf32> to vector<2x256xf32>
    %c3_67 = arith.constant 3 : index
    %c0_68 = arith.constant 0 : index
    %c0_69 = arith.constant 0 : index
    %195 = vector.load %arg6[%c3_67, %c0_68, %c0_69] : memref<8x2x256xf32, #tpu.memory_space<vmem>>, vector<1x2x256xf32>
    %196 = vector.shape_cast %195 : vector<1x2x256xf32> to vector<2x256xf32>
    %197 = vector.shape_cast %194 : vector<2x256xf32> to vector<1x2x256xf32>
    tpu.vector_store %arg6[%c3_67, %c0_68, %c0_69], %197 {strides = array<i32>} : memref<8x2x256xf32, #tpu.memory_space<vmem>>, vector<1x2x256xf32>,
    %c8_i32_70 = arith.constant 8 : i32
    %198 = arith.muli %arg0, %c8_i32_70 : i32
    %c4_i32 = arith.constant 4 : i32
    %199 = arith.addi %198, %c4_i32 : i32
    %c2_i32_71 = arith.constant 2 : i32
    %200 = arith.muli %c2_i32_71, %199 : i32
    %201 = arith.index_cast %200 : i32 to index
    %202 = memref.load %arg2[%201] : memref<16xf32, #tpu.memory_space<smem>>
    %c2_i32_72 = arith.constant 2 : i32
    %203 = arith.muli %c2_i32_72, %199 : i32
    %c1_i32_73 = arith.constant 1 : i32
    %204 = arith.addi %203, %c1_i32_73 : i32
    %205 = arith.index_cast %204 : i32 to index
    %206 = memref.load %arg2[%205] : memref<16xf32, #tpu.memory_space<smem>>
    %207 = vector.broadcast %202 : f32 to vector<1x256xf32>
    %208 = arith.mulf %207, %0 : vector<1x256xf32>
    %209 = vector.broadcast %206 : f32 to vector<1x256xf32>
    %210 = arith.mulf %209, %1 : vector<1x256xf32>
    %211 = arith.subf %208, %210 : vector<1x256xf32>
    %cst_74 = arith.constant 7.500000e+00 : f32
    %212 = vector.broadcast %cst_74 : f32 to vector<1x256xf32>
    %213 = arith.addf %211, %212 : vector<1x256xf32>
    %214 = vector.broadcast %206 : f32 to vector<1x256xf32>
    %215 = arith.mulf %214, %0 : vector<1x256xf32>
    %216 = vector.broadcast %202 : f32 to vector<1x256xf32>
    %217 = arith.mulf %216, %1 : vector<1x256xf32>
    %218 = arith.addf %215, %217 : vector<1x256xf32>
    %cst_75 = arith.constant 7.500000e+00 : f32
    %219 = vector.broadcast %cst_75 : f32 to vector<1x256xf32>
    %220 = arith.addf %218, %219 : vector<1x256xf32>
    %221 = vector.broadcast %213 : vector<1x256xf32> to vector<16x256xf32>
    %222 = arith.subf %5, %221 : vector<16x256xf32>
    %223 = math.absf %222 : vector<16x256xf32>
    %cst_76 = arith.constant 1.000000e+00 : f32
    %224 = vector.broadcast %cst_76 : f32 to vector<16x256xf32>
    %225 = arith.subf %224, %223 : vector<16x256xf32>
    %cst_77 = arith.constant 0.000000e+00 : f32
    %226 = vector.broadcast %cst_77 : f32 to vector<16x256xf32>
    %227 = arith.maximumf %226, %225 : vector<16x256xf32>
    %228 = vector.broadcast %220 : vector<1x256xf32> to vector<16x256xf32>
    %229 = arith.subf %3, %228 : vector<16x256xf32>
    %230 = math.absf %229 : vector<16x256xf32>
    %cst_78 = arith.constant 1.000000e+00 : f32
    %231 = vector.broadcast %cst_78 : f32 to vector<16x256xf32>
    %232 = arith.subf %231, %230 : vector<16x256xf32>
    %cst_79 = arith.constant 0.000000e+00 : f32
    %233 = vector.broadcast %cst_79 : f32 to vector<16x256xf32>
    %234 = arith.maximumf %233, %232 : vector<16x256xf32>
    %c4 = arith.constant 4 : index
    %c0_80 = arith.constant 0 : index
    %c0_81 = arith.constant 0 : index
    %235 = vector.load %arg5[%c4, %c0_80, %c0_81] : memref<8x32x16xf32, #tpu.memory_space<vmem>>, vector<1x32x16xf32>
    %236 = vector.shape_cast %235 : vector<1x32x16xf32> to vector<32x16xf32>
    %cst_82 = arith.constant dense<0.000000e+00> : vector<32x256xf32>
    %237 = tpu.matmul %236, %227, %cst_82 {dimension_numbers = #tpu.dot_dimension_numbers<[1], [0], [0], [1], [0, 0, 1, 1], [], []>} : vector<32x16xf32>, vector<16x256xf32>, vector<32x256xf32> -> vector<32x256xf32>
    %238 = vector.shape_cast %237 : vector<32x256xf32> to vector<2x16x256xf32>
    %239 = vector.shape_cast %234 : vector<16x256xf32> to vector<1x16x256xf32>
    %240 = vector.broadcast %239 : vector<1x16x256xf32> to vector<2x16x256xf32>
    %241 = arith.mulf %238, %240 : vector<2x16x256xf32>
    %cst_83 = arith.constant dense<0.000000e+00> : vector<2x256xf32>
    %242 = vector.multi_reduction <add>, %241, %cst_83 [1] : vector<2x16x256xf32> to vector<2x256xf32>
    %c4_84 = arith.constant 4 : index
    %c0_85 = arith.constant 0 : index
    %c0_86 = arith.constant 0 : index
    %243 = vector.load %arg6[%c4_84, %c0_85, %c0_86] : memref<8x2x256xf32, #tpu.memory_space<vmem>>, vector<1x2x256xf32>
    %244 = vector.shape_cast %243 : vector<1x2x256xf32> to vector<2x256xf32>
    %245 = vector.shape_cast %242 : vector<2x256xf32> to vector<1x2x256xf32>
    tpu.vector_store %arg6[%c4_84, %c0_85, %c0_86], %245 {strides = array<i32>} : memref<8x2x256xf32, #tpu.memory_space<vmem>>, vector<1x2x256xf32>,
    %c8_i32_87 = arith.constant 8 : i32
    %246 = arith.muli %arg0, %c8_i32_87 : i32
    %c5_i32 = arith.constant 5 : i32
    %247 = arith.addi %246, %c5_i32 : i32
    %c2_i32_88 = arith.constant 2 : i32
    %248 = arith.muli %c2_i32_88, %247 : i32
    %249 = arith.index_cast %248 : i32 to index
    %250 = memref.load %arg2[%249] : memref<16xf32, #tpu.memory_space<smem>>
    %c2_i32_89 = arith.constant 2 : i32
    %251 = arith.muli %c2_i32_89, %247 : i32
    %c1_i32_90 = arith.constant 1 : i32
    %252 = arith.addi %251, %c1_i32_90 : i32
    %253 = arith.index_cast %252 : i32 to index
    %254 = memref.load %arg2[%253] : memref<16xf32, #tpu.memory_space<smem>>
    %255 = vector.broadcast %250 : f32 to vector<1x256xf32>
    %256 = arith.mulf %255, %0 : vector<1x256xf32>
    %257 = vector.broadcast %254 : f32 to vector<1x256xf32>
    %258 = arith.mulf %257, %1 : vector<1x256xf32>
    %259 = arith.subf %256, %258 : vector<1x256xf32>
    %cst_91 = arith.constant 7.500000e+00 : f32
    %260 = vector.broadcast %cst_91 : f32 to vector<1x256xf32>
    %261 = arith.addf %259, %260 : vector<1x256xf32>
    %262 = vector.broadcast %254 : f32 to vector<1x256xf32>
    %263 = arith.mulf %262, %0 : vector<1x256xf32>
    %264 = vector.broadcast %250 : f32 to vector<1x256xf32>
    %265 = arith.mulf %264, %1 : vector<1x256xf32>
    %266 = arith.addf %263, %265 : vector<1x256xf32>
    %cst_92 = arith.constant 7.500000e+00 : f32
    %267 = vector.broadcast %cst_92 : f32 to vector<1x256xf32>
    %268 = arith.addf %266, %267 : vector<1x256xf32>
    %269 = vector.broadcast %261 : vector<1x256xf32> to vector<16x256xf32>
    %270 = arith.subf %5, %269 : vector<16x256xf32>
    %271 = math.absf %270 : vector<16x256xf32>
    %cst_93 = arith.constant 1.000000e+00 : f32
    %272 = vector.broadcast %cst_93 : f32 to vector<16x256xf32>
    %273 = arith.subf %272, %271 : vector<16x256xf32>
    %cst_94 = arith.constant 0.000000e+00 : f32
    %274 = vector.broadcast %cst_94 : f32 to vector<16x256xf32>
    %275 = arith.maximumf %274, %273 : vector<16x256xf32>
    %276 = vector.broadcast %268 : vector<1x256xf32> to vector<16x256xf32>
    %277 = arith.subf %3, %276 : vector<16x256xf32>
    %278 = math.absf %277 : vector<16x256xf32>
    %cst_95 = arith.constant 1.000000e+00 : f32
    %279 = vector.broadcast %cst_95 : f32 to vector<16x256xf32>
    %280 = arith.subf %279, %278 : vector<16x256xf32>
    %cst_96 = arith.constant 0.000000e+00 : f32
    %281 = vector.broadcast %cst_96 : f32 to vector<16x256xf32>
    %282 = arith.maximumf %281, %280 : vector<16x256xf32>
    %c5 = arith.constant 5 : index
    %c0_97 = arith.constant 0 : index
    %c0_98 = arith.constant 0 : index
    %283 = vector.load %arg5[%c5, %c0_97, %c0_98] : memref<8x32x16xf32, #tpu.memory_space<vmem>>, vector<1x32x16xf32>
    %284 = vector.shape_cast %283 : vector<1x32x16xf32> to vector<32x16xf32>
    %cst_99 = arith.constant dense<0.000000e+00> : vector<32x256xf32>
    %285 = tpu.matmul %284, %275, %cst_99 {dimension_numbers = #tpu.dot_dimension_numbers<[1], [0], [0], [1], [0, 0, 1, 1], [], []>} : vector<32x16xf32>, vector<16x256xf32>, vector<32x256xf32> -> vector<32x256xf32>
    %286 = vector.shape_cast %285 : vector<32x256xf32> to vector<2x16x256xf32>
    %287 = vector.shape_cast %282 : vector<16x256xf32> to vector<1x16x256xf32>
    %288 = vector.broadcast %287 : vector<1x16x256xf32> to vector<2x16x256xf32>
    %289 = arith.mulf %286, %288 : vector<2x16x256xf32>
    %cst_100 = arith.constant dense<0.000000e+00> : vector<2x256xf32>
    %290 = vector.multi_reduction <add>, %289, %cst_100 [1] : vector<2x16x256xf32> to vector<2x256xf32>
    %c5_101 = arith.constant 5 : index
    %c0_102 = arith.constant 0 : index
    %c0_103 = arith.constant 0 : index
    %291 = vector.load %arg6[%c5_101, %c0_102, %c0_103] : memref<8x2x256xf32, #tpu.memory_space<vmem>>, vector<1x2x256xf32>
    %292 = vector.shape_cast %291 : vector<1x2x256xf32> to vector<2x256xf32>
    %293 = vector.shape_cast %290 : vector<2x256xf32> to vector<1x2x256xf32>
    tpu.vector_store %arg6[%c5_101, %c0_102, %c0_103], %293 {strides = array<i32>} : memref<8x2x256xf32, #tpu.memory_space<vmem>>, vector<1x2x256xf32>,
    %c8_i32_104 = arith.constant 8 : i32
    %294 = arith.muli %arg0, %c8_i32_104 : i32
    %c6_i32 = arith.constant 6 : i32
    %295 = arith.addi %294, %c6_i32 : i32
    %c2_i32_105 = arith.constant 2 : i32
    %296 = arith.muli %c2_i32_105, %295 : i32
    %297 = arith.index_cast %296 : i32 to index
    %298 = memref.load %arg2[%297] : memref<16xf32, #tpu.memory_space<smem>>
    %c2_i32_106 = arith.constant 2 : i32
    %299 = arith.muli %c2_i32_106, %295 : i32
    %c1_i32_107 = arith.constant 1 : i32
    %300 = arith.addi %299, %c1_i32_107 : i32
    %301 = arith.index_cast %300 : i32 to index
    %302 = memref.load %arg2[%301] : memref<16xf32, #tpu.memory_space<smem>>
    %303 = vector.broadcast %298 : f32 to vector<1x256xf32>
    %304 = arith.mulf %303, %0 : vector<1x256xf32>
    %305 = vector.broadcast %302 : f32 to vector<1x256xf32>
    %306 = arith.mulf %305, %1 : vector<1x256xf32>
    %307 = arith.subf %304, %306 : vector<1x256xf32>
    %cst_108 = arith.constant 7.500000e+00 : f32
    %308 = vector.broadcast %cst_108 : f32 to vector<1x256xf32>
    %309 = arith.addf %307, %308 : vector<1x256xf32>
    %310 = vector.broadcast %302 : f32 to vector<1x256xf32>
    %311 = arith.mulf %310, %0 : vector<1x256xf32>
    %312 = vector.broadcast %298 : f32 to vector<1x256xf32>
    %313 = arith.mulf %312, %1 : vector<1x256xf32>
    %314 = arith.addf %311, %313 : vector<1x256xf32>
    %cst_109 = arith.constant 7.500000e+00 : f32
    %315 = vector.broadcast %cst_109 : f32 to vector<1x256xf32>
    %316 = arith.addf %314, %315 : vector<1x256xf32>
    %317 = vector.broadcast %309 : vector<1x256xf32> to vector<16x256xf32>
    %318 = arith.subf %5, %317 : vector<16x256xf32>
    %319 = math.absf %318 : vector<16x256xf32>
    %cst_110 = arith.constant 1.000000e+00 : f32
    %320 = vector.broadcast %cst_110 : f32 to vector<16x256xf32>
    %321 = arith.subf %320, %319 : vector<16x256xf32>
    %cst_111 = arith.constant 0.000000e+00 : f32
    %322 = vector.broadcast %cst_111 : f32 to vector<16x256xf32>
    %323 = arith.maximumf %322, %321 : vector<16x256xf32>
    %324 = vector.broadcast %316 : vector<1x256xf32> to vector<16x256xf32>
    %325 = arith.subf %3, %324 : vector<16x256xf32>
    %326 = math.absf %325 : vector<16x256xf32>
    %cst_112 = arith.constant 1.000000e+00 : f32
    %327 = vector.broadcast %cst_112 : f32 to vector<16x256xf32>
    %328 = arith.subf %327, %326 : vector<16x256xf32>
    %cst_113 = arith.constant 0.000000e+00 : f32
    %329 = vector.broadcast %cst_113 : f32 to vector<16x256xf32>
    %330 = arith.maximumf %329, %328 : vector<16x256xf32>
    %c6 = arith.constant 6 : index
    %c0_114 = arith.constant 0 : index
    %c0_115 = arith.constant 0 : index
    %331 = vector.load %arg5[%c6, %c0_114, %c0_115] : memref<8x32x16xf32, #tpu.memory_space<vmem>>, vector<1x32x16xf32>
    %332 = vector.shape_cast %331 : vector<1x32x16xf32> to vector<32x16xf32>
    %cst_116 = arith.constant dense<0.000000e+00> : vector<32x256xf32>
    %333 = tpu.matmul %332, %323, %cst_116 {dimension_numbers = #tpu.dot_dimension_numbers<[1], [0], [0], [1], [0, 0, 1, 1], [], []>} : vector<32x16xf32>, vector<16x256xf32>, vector<32x256xf32> -> vector<32x256xf32>
    %334 = vector.shape_cast %333 : vector<32x256xf32> to vector<2x16x256xf32>
    %335 = vector.shape_cast %330 : vector<16x256xf32> to vector<1x16x256xf32>
    %336 = vector.broadcast %335 : vector<1x16x256xf32> to vector<2x16x256xf32>
    %337 = arith.mulf %334, %336 : vector<2x16x256xf32>
    %cst_117 = arith.constant dense<0.000000e+00> : vector<2x256xf32>
    %338 = vector.multi_reduction <add>, %337, %cst_117 [1] : vector<2x16x256xf32> to vector<2x256xf32>
    %c6_118 = arith.constant 6 : index
    %c0_119 = arith.constant 0 : index
    %c0_120 = arith.constant 0 : index
    %339 = vector.load %arg6[%c6_118, %c0_119, %c0_120] : memref<8x2x256xf32, #tpu.memory_space<vmem>>, vector<1x2x256xf32>
    %340 = vector.shape_cast %339 : vector<1x2x256xf32> to vector<2x256xf32>
    %341 = vector.shape_cast %338 : vector<2x256xf32> to vector<1x2x256xf32>
    tpu.vector_store %arg6[%c6_118, %c0_119, %c0_120], %341 {strides = array<i32>} : memref<8x2x256xf32, #tpu.memory_space<vmem>>, vector<1x2x256xf32>,
    %c8_i32_121 = arith.constant 8 : i32
    %342 = arith.muli %arg0, %c8_i32_121 : i32
    %c7_i32 = arith.constant 7 : i32
    %343 = arith.addi %342, %c7_i32 : i32
    %c2_i32_122 = arith.constant 2 : i32
    %344 = arith.muli %c2_i32_122, %343 : i32
    %345 = arith.index_cast %344 : i32 to index
    %346 = memref.load %arg2[%345] : memref<16xf32, #tpu.memory_space<smem>>
    %c2_i32_123 = arith.constant 2 : i32
    %347 = arith.muli %c2_i32_123, %343 : i32
    %c1_i32_124 = arith.constant 1 : i32
    %348 = arith.addi %347, %c1_i32_124 : i32
    %349 = arith.index_cast %348 : i32 to index
    %350 = memref.load %arg2[%349] : memref<16xf32, #tpu.memory_space<smem>>
    %351 = vector.broadcast %346 : f32 to vector<1x256xf32>
    %352 = arith.mulf %351, %0 : vector<1x256xf32>
    %353 = vector.broadcast %350 : f32 to vector<1x256xf32>
    %354 = arith.mulf %353, %1 : vector<1x256xf32>
    %355 = arith.subf %352, %354 : vector<1x256xf32>
    %cst_125 = arith.constant 7.500000e+00 : f32
    %356 = vector.broadcast %cst_125 : f32 to vector<1x256xf32>
    %357 = arith.addf %355, %356 : vector<1x256xf32>
    %358 = vector.broadcast %350 : f32 to vector<1x256xf32>
    %359 = arith.mulf %358, %0 : vector<1x256xf32>
    %360 = vector.broadcast %346 : f32 to vector<1x256xf32>
    %361 = arith.mulf %360, %1 : vector<1x256xf32>
    %362 = arith.addf %359, %361 : vector<1x256xf32>
    %cst_126 = arith.constant 7.500000e+00 : f32
    %363 = vector.broadcast %cst_126 : f32 to vector<1x256xf32>
    %364 = arith.addf %362, %363 : vector<1x256xf32>
    %365 = vector.broadcast %357 : vector<1x256xf32> to vector<16x256xf32>
    %366 = arith.subf %5, %365 : vector<16x256xf32>
    %367 = math.absf %366 : vector<16x256xf32>
    %cst_127 = arith.constant 1.000000e+00 : f32
    %368 = vector.broadcast %cst_127 : f32 to vector<16x256xf32>
    %369 = arith.subf %368, %367 : vector<16x256xf32>
    %cst_128 = arith.constant 0.000000e+00 : f32
    %370 = vector.broadcast %cst_128 : f32 to vector<16x256xf32>
    %371 = arith.maximumf %370, %369 : vector<16x256xf32>
    %372 = vector.broadcast %364 : vector<1x256xf32> to vector<16x256xf32>
    %373 = arith.subf %3, %372 : vector<16x256xf32>
    %374 = math.absf %373 : vector<16x256xf32>
    %cst_129 = arith.constant 1.000000e+00 : f32
    %375 = vector.broadcast %cst_129 : f32 to vector<16x256xf32>
    %376 = arith.subf %375, %374 : vector<16x256xf32>
    %cst_130 = arith.constant 0.000000e+00 : f32
    %377 = vector.broadcast %cst_130 : f32 to vector<16x256xf32>
    %378 = arith.maximumf %377, %376 : vector<16x256xf32>
    %c7 = arith.constant 7 : index
    %c0_131 = arith.constant 0 : index
    %c0_132 = arith.constant 0 : index
    %379 = vector.load %arg5[%c7, %c0_131, %c0_132] : memref<8x32x16xf32, #tpu.memory_space<vmem>>, vector<1x32x16xf32>
    %380 = vector.shape_cast %379 : vector<1x32x16xf32> to vector<32x16xf32>
    %cst_133 = arith.constant dense<0.000000e+00> : vector<32x256xf32>
    %381 = tpu.matmul %380, %371, %cst_133 {dimension_numbers = #tpu.dot_dimension_numbers<[1], [0], [0], [1], [0, 0, 1, 1], [], []>} : vector<32x16xf32>, vector<16x256xf32>, vector<32x256xf32> -> vector<32x256xf32>
    %382 = vector.shape_cast %381 : vector<32x256xf32> to vector<2x16x256xf32>
    %383 = vector.shape_cast %378 : vector<16x256xf32> to vector<1x16x256xf32>
    %384 = vector.broadcast %383 : vector<1x16x256xf32> to vector<2x16x256xf32>
    %385 = arith.mulf %382, %384 : vector<2x16x256xf32>
    %cst_134 = arith.constant dense<0.000000e+00> : vector<2x256xf32>
    %386 = vector.multi_reduction <add>, %385, %cst_134 [1] : vector<2x16x256xf32> to vector<2x256xf32>
    %c7_135 = arith.constant 7 : index
    %c0_136 = arith.constant 0 : index
    %c0_137 = arith.constant 0 : index
    %387 = vector.load %arg6[%c7_135, %c0_136, %c0_137] : memref<8x2x256xf32, #tpu.memory_space<vmem>>, vector<1x2x256xf32>
    %388 = vector.shape_cast %387 : vector<1x2x256xf32> to vector<2x256xf32>
    %389 = vector.shape_cast %386 : vector<2x256xf32> to vector<1x2x256xf32>
    tpu.vector_store %arg6[%c7_135, %c0_136, %c0_137], %389 {strides = array<i32>} : memref<8x2x256xf32, #tpu.memory_space<vmem>>, vector<1x2x256xf32>,
    return
  }
  func.func @transform_0(%arg0: i32, %arg1: i32) -> i32 {
    %c0_i32 = arith.constant 0 : i32
    %c0_i32_0 = arith.constant 0 : i32
    return %c0_i32 : i32
  }
  func.func @transform_1(%arg0: i32, %arg1: i32) -> (i32, i32) {
    %c0_i32 = arith.constant 0 : i32
    %c0_i32_0 = arith.constant 0 : i32
    return %c0_i32, %arg1 : i32, i32
  }
  func.func @transform_2(%arg0: i32, %arg1: i32) -> (i32, i32) {
    %c0_i32 = arith.constant 0 : i32
    %c0_i32_0 = arith.constant 0 : i32
    return %c0_i32, %arg1 : i32, i32
  }
  func.func @transform_3(%arg0: i32, %arg1: i32) -> (i32, i32, i32) {
    %c0_i32 = arith.constant 0 : i32
    %c0_i32_0 = arith.constant 0 : i32
    %c0_i32_1 = arith.constant 0 : i32
    return %arg0, %c0_i32, %c0_i32_0 : i32, i32, i32
  }
  func.func @transform_4(%arg0: i32, %arg1: i32) -> (i32, i32, i32) {
    %c0_i32 = arith.constant 0 : i32
    %c0_i32_0 = arith.constant 0 : i32
    return %arg0, %c0_i32, %arg1 : i32, i32, i32
  }
}

</mosaic_0001>

<llo_original>
// kernel: tpu_custom_call.1
$region0: #{tpu_custom_call.1}
  #allocation0 [shape = 'u32[]', space=smem, size = 0x4, offset = 0x4, fixed_abs, tag = 'smem constant byte address 0x4 - core index']
  #allocation1 [shape = 'u32[144,128]{1,0:T(1,128)}', space=vmem, size = 0x12000, scoped, tag = 'internal scratch']
  %s0 = inlined_call_operand.vmem [shape: f32[16], index: 0, kind: input, shape index: {}]
  %s1 = inlined_call_operand.vmem [shape: f32[1,256], index: 1, kind: input, shape index: {}]
  %s2 = inlined_call_operand.vmem [shape: f32[1,256], index: 2, kind: input, shape index: {}]
  %s3 = inlined_call_operand.vmem [shape: f32[8,32,16], index: 3, kind: input, shape index: {}]
  %s4 = inlined_call_operand.hbm [shape: f32[8,2,256], index: 4, kind: output, shape index: {}]
  %s5 = sld [smem:[#allocation0]]
  $region30: #{tpu_custom_call.1} parent=0
    _
  %s7 = ssub.s32 1, %s5
  %s8 = scalar_select 0, %s7, %s5
  $region1: #{tpu_custom_call.1} parent=0
    #allocation2 [shape = 'u8[512]{0}', space=smem, size = 0x200, scoped, tag = 'input window, operand 0, single buffered']
    #allocation3 [shape = 's32[1]{0}', space=sflag, size = 0x4, scoped, tag = 'scoped memory for tpu_custom_call.1']
    #allocation4 [shape = 's32[1]{0}', space=sflag, size = 0x4, scoped, tag = 'scoped memory for tpu_custom_call.1']
    #allocation5 [shape = 'u8[16384]{0}', space=vmem, size = 0x4000, scoped, tag = 'output window, operand 0, single buffered']
    %9 = vsyncpa [#allocation4], 0
    %10 = vsyncpa [#allocation3], 0
    // Predicated region
    $region2: #{tpu_custom_call.1} parent=1 // pred_check
      _
    $region3: #{tpu_custom_call.1} parent=1 // pred_check_branch
      %12 = sbr.rel (0) target = $region5
    $region4: #{tpu_custom_call.1} parent=1 // pred_region
      %s14 = ssub.s32 16, 16
      %15 = vsyncadd [#allocation4], %s14
      %s17 = sshll.u32 %s0, 4
      %s18 = int_to_ptr.vmem [resolvable:$true] %s17
      %20 = dma.vmem_to_smem %s18, 16, [#allocation2], [#allocation4]
    $region5: #{tpu_custom_call.1} parent=1 // pred_fallthru
      _
    // Predicated region
    $region6: #{tpu_custom_call.1} parent=1 // pred_check
      _
    $region7: #{tpu_custom_call.1} parent=1 // pred_check_branch
      %22 = sbr.rel (0) target = $region9
    $region8: #{tpu_custom_call.1} parent=1 // pred_region
      _
    $region9: #{tpu_custom_call.1} parent=1 // pred_fallthru
      _
    // Predicated region
    $region10: #{tpu_custom_call.1} parent=1 // pred_check
      _
    $region11: #{tpu_custom_call.1} parent=1 // pred_check_branch
      %24 = sbr.rel (0) target = $region13
    $region12: #{tpu_custom_call.1} parent=1 // pred_region
      _
    $region13: #{tpu_custom_call.1} parent=1 // pred_fallthru
      _
    // Predicated region
    $region14: #{tpu_custom_call.1} parent=1 // pred_check
      _
    $region15: #{tpu_custom_call.1} parent=1 // pred_check_branch
      %26 = sbr.rel (0) target = $region17
    $region16: #{tpu_custom_call.1} parent=1 // pred_region
      _
    $region17: #{tpu_custom_call.1} parent=1 // pred_fallthru
      _
    // Predicated region
    $region18: #{tpu_custom_call.1} parent=1 // pred_check
      _
    $region19: #{tpu_custom_call.1} parent=1 // pred_check_branch
      %28 = sbr.rel (0) target = $region21
    $region20: #{tpu_custom_call.1} parent=1 // pred_region
      %29 = dma.done [#allocation4], 16
    $region21: #{tpu_custom_call.1} parent=1 // pred_fallthru
      _
    %30 = sfence
    %v31 = vld [vmem:[%s1] sm:$0x3]
    %v32 = vld [vmem:[%s2] sm:$0x3]
    %v33 = vlaneseq
    %v34 = vshrl.u32 %v33, 7
    %v35 = vadd.s32 %v34, 8
    %v36 = vcvt.s32.f32 %v34
    %v37 = vcvt.s32.f32 %v35
    %s38 = smul.u32 0, 16
    %s39 = sld [smem:[#allocation2 + %s38]]
    %s40 = sadd.s32 %s38, 1
    %s41 = sld [smem:[#allocation2 + %s40]]
    %v42 = vstv %s39
    %v43 = vmul.f32 %v42, %v31
    %v44 = vstv %s41
    %v45 = vmul.f32 %v44, %v32
    %v46 = vsub.f32 %v43, %v45
    %v47 = vadd.f32 %v46, 7.5
    %v48 = vmul.f32 %v44, %v31
    %v49 = vmul.f32 %v42, %v32
    %v50 = vadd.f32 %v48, %v49
    %v51 = vadd.f32 %v50, 7.5
    %v53 = vlaneseq
    %v54 = vshrl.u32 %v53, 7
    %v55 = vsub.s32 0, %v54
    %v56 = vrot.slane %v47, %v55
    %v57 = vlaneseq
    %v58 = vshrl.u32 %v57, 7
    %v59 = vsub.s32 1, %v58
    %v60 = vrot.slane %v47, %v59
    %v63 = vsub.f32 %v36, %v56
    %v64 = vsub.f32 %v36, %v60
    %v65 = vsub.f32 %v37, %v56
    %v66 = vsub.f32 %v37, %v60
    %v67 = vand.u32 2147483647, %v63
    %v68 = vand.u32 2147483647, %v64
    %v69 = vand.u32 2147483647, %v65
    %v70 = vand.u32 2147483647, %v66
    %v71 = vsub.f32 1.0, %v67
    %v72 = vsub.f32 1.0, %v68
    %v73 = vsub.f32 1.0, %v69
    %v74 = vsub.f32 1.0, %v70
    %v75 = vmax.f32 %v71, 0.0
    %v76 = vmax.f32 %v72, 0.0
    %v77 = vmax.f32 %v73, 0.0
    %v78 = vmax.f32 %v74, 0.0
    %v80 = vlaneseq
    %v81 = vshrl.u32 %v80, 7
    %v82 = vsub.s32 0, %v81
    %v83 = vrot.slane %v51, %v82
    %v84 = vlaneseq
    %v85 = vshrl.u32 %v84, 7
    %v86 = vsub.s32 1, %v85
    %v87 = vrot.slane %v51, %v86
    %v90 = vsub.f32 %v36, %v83
    %v91 = vsub.f32 %v36, %v87
    %v92 = vsub.f32 %v37, %v83
    %v93 = vsub.f32 %v37, %v87
    %v94 = vand.u32 2147483647, %v90
    %v95 = vand.u32 2147483647, %v91
    %v96 = vand.u32 2147483647, %v92
    %v97 = vand.u32 2147483647, %v93
    %v98 = vsub.f32 1.0, %v94
    %v99 = vsub.f32 1.0, %v95
    %v100 = vsub.f32 1.0, %v96
    %v101 = vsub.f32 1.0, %v97
    %v102 = vmax.f32 %v98, 0.0
    %v103 = vmax.f32 %v99, 0.0
    %v104 = vmax.f32 %v100, 0.0
    %v105 = vmax.f32 %v101, 0.0
    %v106 = vld [vmem:[%s3] sm:$0xff]
    %v107 = vld [vmem:[%s3 + $0x8] sm:$0xff]
    %v108 = vld [vmem:[%s3 + $0x10] sm:$0xff]
    %v109 = vld [vmem:[%s3 + $0x18] sm:$0xff]
    %vm110 = vcmask 130048
    %v112 = vsel %vm110, %v106, 0
    %v115 = vsel %vm110, %v107, 0
    %v118 = vsel %vm110, %v108, 0
    %v121 = vsel %vm110, %v109, 0
    %123 = vmatprep.subr.mxu0 %v76
    %124 = vmatpush1.msra.mxu0 %v75
    %125 = vmatprep.subr.mxu0 %v78
    %126 = vmatpush1.msra.mxu0 %v77
    %127 = vmatprep.subr.mxu0 0.0
    %128 = vmatpush1.msra.mxu0 0.0
    %129 = vmatprep.subr.mxu0 0.0
    %130 = vmatpush1.msra.mxu0 0.0
    %131 = vmatprep.subr.mxu0 0.0
    %132 = vmatpush1.msra.mxu0 0.0
    %133 = vmatprep.subr.mxu0 0.0
    %134 = vmatpush1.msra.mxu0 0.0
    %135 = vmatprep.subr.mxu0 0.0
    %136 = vmatpush1.msra.mxu0 0.0
    %137 = vmatprep.subr.mxu0 0.0
    %138 = vmatpush1.msra.mxu0 0.0
    %139 = vmatprep.subr.mxu0 0.0
    %140 = vmatpush1.msra.mxu0 0.0
    %141 = vmatprep.subr.mxu0 0.0
    %142 = vmatpush1.msra.mxu0 0.0
    %143 = vmatprep.subr.mxu0 0.0
    %144 = vmatpush1.msra.mxu0 0.0
    %145 = vmatprep.subr.mxu0 0.0
    %146 = vmatpush1.msra.mxu0 0.0
    %147 = vmatprep.subr.mxu0 0.0
    %148 = vmatpush1.msra.mxu0 0.0
    %149 = vmatprep.subr.mxu0 0.0
    %150 = vmatpush1.msra.mxu0 0.0
    %151 = vmatprep.subr.mxu0 0.0
    %152 = vmatpush1.msra.mxu0 0.0
    %153 = vmatprep.subr.mxu0 0.0
    %154 = vmatpush1.msra.mxu0 0.0
    %155 = vmatprep.subr.mxu0 0.0
    %156 = vmatpush1.msra.mxu0 0.0
    %157 = vmatprep.subr.mxu0 0.0
    %158 = vmatpush1.msra.mxu0 0.0
    %159 = vmatprep.subr.mxu0 0.0
    %160 = vmatpush1.msra.mxu0 0.0
    %161 = vmatprep.subr.mxu0 0.0
    %162 = vmatpush1.msra.mxu0 0.0
    %163 = vmatprep.subr.mxu0 0.0
    %164 = vmatpush1.msra.mxu0 0.0
    %165 = vmatprep.subr.mxu0 0.0
    %166 = vmatpush1.msra.mxu0 0.0
    %167 = vmatprep.subr.mxu0 0.0
    %168 = vmatpush1.msra.mxu0 0.0
    %169 = vmatprep.subr.mxu0 0.0
    %170 = vmatpush1.msra.mxu0 0.0
    %171 = vmatprep.subr.mxu0 0.0
    %172 = vmatpush1.msra.mxu0 0.0
    %173 = vmatprep.subr.mxu0 0.0
    %174 = vmatpush1.msra.mxu0 0.0
    %175 = vmatprep.subr.mxu0 0.0
    %176 = vmatpush1.msra.mxu0 0.0
    %177 = vmatprep.subr.mxu0 0.0
    %178 = vmatpush1.msra.mxu0 0.0
    %179 = vmatprep.subr.mxu0 0.0
    %180 = vmatpush1.msra.mxu0 0.0
    %181 = vmatprep.subr.mxu0 0.0
    %182 = vmatpush1.msra.mxu0 0.0
    %183 = vmatprep.subr.mxu0 0.0
    %184 = vmatpush1.msra.mxu0 0.0
    %185 = vmatprep.subr.mxu0 0.0
    %186 = vmatpush1.msra.mxu0 0.0
    %187 = vmatprep.mubr.f32.mxu0 0.0
    %188 = vmatmul.mubr.f32.gmra.mrb[0].mxu0 %v112
    %v189 = vpop.f32.mrb[0].mxu0
    %v190 = vadd.f32 0.0, %v189
    %v191 = vpop.f32.mrb[0].mxu0
    %v192 = vadd.f32 0.0, %v191
    %193 = vmatprep.mubr.f32.mxu0 0.0
    %194 = vmatmul.mubr.f32.gmra.mrb[0].mxu0 %v115
    %v195 = vpop.f32.mrb[0].mxu0
    %v196 = vadd.f32 0.0, %v195
    %v197 = vpop.f32.mrb[0].mxu0
    %v198 = vadd.f32 0.0, %v197
    %199 = vmatprep.mubr.f32.mxu0 0.0
    %200 = vmatmul.mubr.f32.gmra.mrb[0].mxu0 %v118
    %v201 = vpop.f32.mrb[0].mxu0
    %v202 = vadd.f32 0.0, %v201
    %v203 = vpop.f32.mrb[0].mxu0
    %v204 = vadd.f32 0.0, %v203
    %205 = vmatprep.mubr.f32.mxu0 0.0
    %206 = vmatmul.mubr.f32.gmra.mrb[0].mxu0 %v121
    %v207 = vpop.f32.mrb[0].mxu0
    %v208 = vadd.f32 0.0, %v207
    %v209 = vpop.f32.mrb[0].mxu0
    %v210 = vadd.f32 0.0, %v209
    %211 = vdwg.mxu0
    %v212 = vmul.f32 %v190, %v102
    %v213 = vmul.f32 %v192, %v103
    %v214 = vmul.f32 %v196, %v104
    %v215 = vmul.f32 %v198, %v105
    %v216 = vmul.f32 %v202, %v102
    %v217 = vmul.f32 %v204, %v103
    %v218 = vmul.f32 %v208, %v104
    %v219 = vmul.f32 %v210, %v105
    %v220 = vadd.f32 %v212, %v214
    %v221 = vrot.slane %v220, 4
    %v222 = vadd.f32 %v220, %v221
    %v223 = vrot.slane %v222, 2
    %v224 = vadd.f32 %v222, %v223
    %v225 = vrot.slane %v224, 1
    %v226 = vadd.f32 %v224, %v225
    %v227 = vadd.f32 %v213, %v215
    %v228 = vrot.slane %v227, 4
    %v229 = vadd.f32 %v227, %v228
    %v230 = vrot.slane %v229, 2
    %v231 = vadd.f32 %v229, %v230
    %v232 = vrot.slane %v231, 1
    %v233 = vadd.f32 %v231, %v232
    %v234 = vadd.f32 %v216, %v218
    %v235 = vrot.slane %v234, 4
    %v236 = vadd.f32 %v234, %v235
    %v237 = vrot.slane %v236, 2
    %v238 = vadd.f32 %v236, %v237
    %v239 = vrot.slane %v238, 1
    %v240 = vadd.f32 %v238, %v239
    %v241 = vadd.f32 %v217, %v219
    %v242 = vrot.slane %v241, 4
    %v243 = vadd.f32 %v241, %v242
    %v244 = vrot.slane %v243, 2
    %v245 = vadd.f32 %v243, %v244
    %v246 = vrot.slane %v245, 1
    %v247 = vadd.f32 %v245, %v246
    %v252 = vcombine.low %v226, %v233
    %v254 = vunpack.c.l.s4 1983009808
    %v255 = vunpack.c.0.s8 %v254
    %v256 = vlaneseq
    %v257 = vshrl.u32 %v256, 7
    %v258 = vsub.s32 %v255, %v257
    %v259 = vrot.slane %v252, %v258
    %v260 = vcombine.low %v240, %v247
    %v262 = vunpack.c.l.s4 1983009808
    %v263 = vunpack.c.0.s8 %v262
    %v264 = vlaneseq
    %v265 = vshrl.u32 %v264, 7
    %v266 = vsub.s32 %v263, %v265
    %v267 = vrot.slane %v260, %v266
    %vm268 = vcmask 1044484
    %v269 = vsel %vm268, %v259, %v259
    %vm270 = vcmask 1046534
    %v271 = vsel %vm270, %v259, %v269
    %v272 = vrot.slane %v267, 7
    %vm273 = vcmask 1041409
    %v274 = vsel %vm273, %v272, %v271
    %vm275 = vcmask 1043459
    %v276 = vsel %vm275, %v272, %v274
    %vm277 = vcmask 1045509
    %v278 = vsel %vm277, %v272, %v276
    %vm279 = vcmask 1047559
    %v280 = vsel %vm279, %v272, %v278
    %282 = vst [vmem:[#allocation5] sm:$0xf] %v280
    %s283 = smul.u32 0, 8
    %s284 = sadd.s32 %s283, 1
    %s285 = smul.u32 %s284, 2
    %s286 = sld [smem:[#allocation2 + %s285]]
    %s287 = sadd.s32 %s285, 1
    %s288 = sld [smem:[#allocation2 + %s287]]
    %v289 = vstv %s286
    %v290 = vmul.f32 %v289, %v31
    %v291 = vstv %s288
    %v292 = vmul.f32 %v291, %v32
    %v293 = vsub.f32 %v290, %v292
    %v294 = vadd.f32 %v293, 7.5
    %v295 = vmul.f32 %v291, %v31
    %v296 = vmul.f32 %v289, %v32
    %v297 = vadd.f32 %v295, %v296
    %v298 = vadd.f32 %v297, 7.5
    %v300 = vlaneseq
    %v301 = vshrl.u32 %v300, 7
    %v302 = vsub.s32 0, %v301
    %v303 = vrot.slane %v294, %v302
    %v304 = vlaneseq
    %v305 = vshrl.u32 %v304, 7
    %v306 = vsub.s32 1, %v305
    %v307 = vrot.slane %v294, %v306
    %v310 = vsub.f32 %v36, %v303
    %v311 = vsub.f32 %v36, %v307
    %v312 = vsub.f32 %v37, %v303
    %v313 = vsub.f32 %v37, %v307
    %v314 = vand.u32 2147483647, %v310
    %v315 = vand.u32 2147483647, %v311
    %v316 = vand.u32 2147483647, %v312
    %v317 = vand.u32 2147483647, %v313
    %v318 = vsub.f32 1.0, %v314
    %v319 = vsub.f32 1.0, %v315
    %v320 = vsub.f32 1.0, %v316
    %v321 = vsub.f32 1.0, %v317
    %v322 = vmax.f32 %v318, 0.0
    %v323 = vmax.f32 %v319, 0.0
    %v324 = vmax.f32 %v320, 0.0
    %v325 = vmax.f32 %v321, 0.0
    %v327 = vlaneseq
    %v328 = vshrl.u32 %v327, 7
    %v329 = vsub.s32 0, %v328
    %v330 = vrot.slane %v298, %v329
    %v331 = vlaneseq
    %v332 = vshrl.u32 %v331, 7
    %v333 = vsub.s32 1, %v332
    %v334 = vrot.slane %v298, %v333
    %v337 = vsub.f32 %v36, %v330
    %v338 = vsub.f32 %v36, %v334
    %v339 = vsub.f32 %v37, %v330
    %v340 = vsub.f32 %v37, %v334
    %v341 = vand.u32 2147483647, %v337
    %v342 = vand.u32 2147483647, %v338
    %v343 = vand.u32 2147483647, %v339
    %v344 = vand.u32 2147483647, %v340
    %v345 = vsub.f32 1.0, %v341
    %v346 = vsub.f32 1.0, %v342
    %v347 = vsub.f32 1.0, %v343
    %v348 = vsub.f32 1.0, %v344
    %v349 = vmax.f32 %v345, 0.0
    %v350 = vmax.f32 %v346, 0.0
    %v351 = vmax.f32 %v347, 0.0
    %v352 = vmax.f32 %v348, 0.0
    %s353 = scalar_lea.vmem %s3, 32
    %v354 = vld [vmem:[%s353] sm:$0xff]
    %v355 = vld [vmem:[%s353 + $0x8] sm:$0xff]
    %v356 = vld [vmem:[%s353 + $0x10] sm:$0xff]
    %v357 = vld [vmem:[%s353 + $0x18] sm:$0xff]
    %v359 = vsel %vm110, %v354, 0
    %v362 = vsel %vm110, %v355, 0
    %v365 = vsel %vm110, %v356, 0
    %v368 = vsel %vm110, %v357, 0
    %370 = vmatprep.subr.mxu0 %v323
    %371 = vmatpush1.msra.mxu0 %v322
    %372 = vmatprep.subr.mxu0 %v325
    %373 = vmatpush1.msra.mxu0 %v324
    %374 = vmatprep.subr.mxu0 0.0
    %375 = vmatpush1.msra.mxu0 0.0
    %376 = vmatprep.subr.mxu0 0.0
    %377 = vmatpush1.msra.mxu0 0.0
    %378 = vmatprep.subr.mxu0 0.0
    %379 = vmatpush1.msra.mxu0 0.0
    %380 = vmatprep.subr.mxu0 0.0
    %381 = vmatpush1.msra.mxu0 0.0
    %382 = vmatprep.subr.mxu0 0.0
    %383 = vmatpush1.msra.mxu0 0.0
    %384 = vmatprep.subr.mxu0 0.0
    %385 = vmatpush1.msra.mxu0 0.0
    %386 = vmatprep.subr.mxu0 0.0
    %387 = vmatpush1.msra.mxu0 0.0
    %388 = vmatprep.subr.mxu0 0.0
    %389 = vmatpush1.msra.mxu0 0.0
    %390 = vmatprep.subr.mxu0 0.0
    %391 = vmatpush1.msra.mxu0 0.0
    %392 = vmatprep.subr.mxu0 0.0
    %393 = vmatpush1.msra.mxu0 0.0
    %394 = vmatprep.subr.mxu0 0.0
    %395 = vmatpush1.msra.mxu0 0.0
    %396 = vmatprep.subr.mxu0 0.0
    %397 = vmatpush1.msra.mxu0 0.0
    %398 = vmatprep.subr.mxu0 0.0
    %399 = vmatpush1.msra.mxu0 0.0
    %400 = vmatprep.subr.mxu0 0.0
    %401 = vmatpush1.msra.mxu0 0.0
    %402 = vmatprep.subr.mxu0 0.0
    %403 = vmatpush1.msra.mxu0 0.0
    %404 = vmatprep.subr.mxu0 0.0
    %405 = vmatpush1.msra.mxu0 0.0
    %406 = vmatprep.subr.mxu0 0.0
    %407 = vmatpush1.msra.mxu0 0.0
    %408 = vmatprep.subr.mxu0 0.0
    %409 = vmatpush1.msra.mxu0 0.0
    %410 = vmatprep.subr.mxu0 0.0
    %411 = vmatpush1.msra.mxu0 0.0
    %412 = vmatprep.subr.mxu0 0.0
    %413 = vmatpush1.msra.mxu0 0.0
    %414 = vmatprep.subr.mxu0 0.0
    %415 = vmatpush1.msra.mxu0 0.0
    %416 = vmatprep.subr.mxu0 0.0
    %417 = vmatpush1.msra.mxu0 0.0
    %418 = vmatprep.subr.mxu0 0.0
    %419 = vmatpush1.msra.mxu0 0.0
    %420 = vmatprep.subr.mxu0 0.0
    %421 = vmatpush1.msra.mxu0 0.0
    %422 = vmatprep.subr.mxu0 0.0
    %423 = vmatpush1.msra.mxu0 0.0
    %424 = vmatprep.subr.mxu0 0.0
    %425 = vmatpush1.msra.mxu0 0.0
    %426 = vmatprep.subr.mxu0 0.0
    %427 = vmatpush1.msra.mxu0 0.0
    %428 = vmatprep.subr.mxu0 0.0
    %429 = vmatpush1.msra.mxu0 0.0
    %430 = vmatprep.subr.mxu0 0.0
    %431 = vmatpush1.msra.mxu0 0.0
    %432 = vmatprep.subr.mxu0 0.0
    %433 = vmatpush1.msra.mxu0 0.0
    %434 = vmatprep.mubr.f32.mxu0 0.0
    %435 = vmatmul.mubr.f32.gmra.mrb[0].mxu0 %v359
    %v436 = vpop.f32.mrb[0].mxu0
    %v437 = vadd.f32 0.0, %v436
    %v438 = vpop.f32.mrb[0].mxu0
    %v439 = vadd.f32 0.0, %v438
    %440 = vmatprep.mubr.f32.mxu0 0.0
    %441 = vmatmul.mubr.f32.gmra.mrb[0].mxu0 %v362
    %v442 = vpop.f32.mrb[0].mxu0
    %v443 = vadd.f32 0.0, %v442
    %v444 = vpop.f32.mrb[0].mxu0
    %v445 = vadd.f32 0.0, %v444
    %446 = vmatprep.mubr.f32.mxu0 0.0
    %447 = vmatmul.mubr.f32.gmra.mrb[0].mxu0 %v365
    %v448 = vpop.f32.mrb[0].mxu0
    %v449 = vadd.f32 0.0, %v448
    %v450 = vpop.f32.mrb[0].mxu0
    %v451 = vadd.f32 0.0, %v450
    %452 = vmatprep.mubr.f32.mxu0 0.0
    %453 = vmatmul.mubr.f32.gmra.mrb[0].mxu0 %v368
    %v454 = vpop.f32.mrb[0].mxu0
    %v455 = vadd.f32 0.0, %v454
    %v456 = vpop.f32.mrb[0].mxu0
    %v457 = vadd.f32 0.0, %v456
    %458 = vdwg.mxu0
    %v459 = vmul.f32 %v437, %v349
    %v460 = vmul.f32 %v439, %v350
    %v461 = vmul.f32 %v443, %v351
    %v462 = vmul.f32 %v445, %v352
    %v463 = vmul.f32 %v449, %v349
    %v464 = vmul.f32 %v451, %v350
    %v465 = vmul.f32 %v455, %v351
    %v466 = vmul.f32 %v457, %v352
    %v467 = vadd.f32 %v459, %v461
    %v468 = vrot.slane %v467, 4
    %v469 = vadd.f32 %v467, %v468
    %v470 = vrot.slane %v469, 2
    %v471 = vadd.f32 %v469, %v470
    %v472 = vrot.slane %v471, 1
    %v473 = vadd.f32 %v471, %v472
    %v474 = vadd.f32 %v460, %v462
    %v475 = vrot.slane %v474, 4
    %v476 = vadd.f32 %v474, %v475
    %v477 = vrot.slane %v476, 2
    %v478 = vadd.f32 %v476, %v477
    %v479 = vrot.slane %v478, 1
    %v480 = vadd.f32 %v478, %v479
    %v481 = vadd.f32 %v463, %v465
    %v482 = vrot.slane %v481, 4
    %v483 = vadd.f32 %v481, %v482
    %v484 = vrot.slane %v483, 2
    %v485 = vadd.f32 %v483, %v484
    %v486 = vrot.slane %v485, 1
    %v487 = vadd.f32 %v485, %v486
    %v488 = vadd.f32 %v464, %v466
    %v489 = vrot.slane %v488, 4
    %v490 = vadd.f32 %v488, %v489
    %v491 = vrot.slane %v490, 2
    %v492 = vadd.f32 %v490, %v491
    %v493 = vrot.slane %v492, 1
    %v494 = vadd.f32 %v492, %v493
    %v499 = vcombine.low %v473, %v480
    %v501 = vunpack.c.l.s4 1983009808
    %v502 = vunpack.c.0.s8 %v501
    %v503 = vlaneseq
    %v504 = vshrl.u32 %v503, 7
    %v505 = vsub.s32 %v502, %v504
    %v506 = vrot.slane %v499, %v505
    %v507 = vcombine.low %v487, %v494
    %v509 = vunpack.c.l.s4 1983009808
    %v510 = vunpack.c.0.s8 %v509
    %v511 = vlaneseq
    %v512 = vshrl.u32 %v511, 7
    %v513 = vsub.s32 %v510, %v512
    %v514 = vrot.slane %v507, %v513
    %v515 = vsel %vm268, %v506, %v506
    %v516 = vsel %vm270, %v506, %v515
    %v517 = vrot.slane %v514, 7
    %v518 = vsel %vm273, %v517, %v516
    %v519 = vsel %vm275, %v517, %v518
    %v520 = vsel %vm277, %v517, %v519
    %v521 = vsel %vm279, %v517, %v520
    %s523 = scalar_lea.vmem [#allocation5], 4
    %524 = vst [vmem:[%s523] sm:$0xf] %v521
    %s525 = sadd.s32 %s283, 2
    %s526 = smul.u32 %s525, 2
    %s527 = sld [smem:[#allocation2 + %s526]]
    %s528 = sadd.s32 %s526, 1
    %s529 = sld [smem:[#allocation2 + %s528]]
    %v530 = vstv %s527
    %v531 = vmul.f32 %v530, %v31
    %v532 = vstv %s529
    %v533 = vmul.f32 %v532, %v32
    %v534 = vsub.f32 %v531, %v533
    %v535 = vadd.f32 %v534, 7.5
    %v536 = vmul.f32 %v532, %v31
    %v537 = vmul.f32 %v530, %v32
    %v538 = vadd.f32 %v536, %v537
    %v539 = vadd.f32 %v538, 7.5
    %v541 = vlaneseq
    %v542 = vshrl.u32 %v541, 7
    %v543 = vsub.s32 0, %v542
    %v544 = vrot.slane %v535, %v543
    %v545 = vlaneseq
    %v546 = vshrl.u32 %v545, 7
    %v547 = vsub.s32 1, %v546
    %v548 = vrot.slane %v535, %v547
    %v551 = vsub.f32 %v36, %v544
    %v552 = vsub.f32 %v36, %v548
    %v553 = vsub.f32 %v37, %v544
    %v554 = vsub.f32 %v37, %v548
    %v555 = vand.u32 2147483647, %v551
    %v556 = vand.u32 2147483647, %v552
    %v557 = vand.u32 2147483647, %v553
    %v558 = vand.u32 2147483647, %v554
    %v559 = vsub.f32 1.0, %v555
    %v560 = vsub.f32 1.0, %v556
    %v561 = vsub.f32 1.0, %v557
    %v562 = vsub.f32 1.0, %v558
    %v563 = vmax.f32 %v559, 0.0
    %v564 = vmax.f32 %v560, 0.0
    %v565 = vmax.f32 %v561, 0.0
    %v566 = vmax.f32 %v562, 0.0
    %v568 = vlaneseq
    %v569 = vshrl.u32 %v568, 7
    %v570 = vsub.s32 0, %v569
    %v571 = vrot.slane %v539, %v570
    %v572 = vlaneseq
    %v573 = vshrl.u32 %v572, 7
    %v574 = vsub.s32 1, %v573
    %v575 = vrot.slane %v539, %v574
    %v578 = vsub.f32 %v36, %v571
    %v579 = vsub.f32 %v36, %v575
    %v580 = vsub.f32 %v37, %v571
    %v581 = vsub.f32 %v37, %v575
    %v582 = vand.u32 2147483647, %v578
    %v583 = vand.u32 2147483647, %v579
    %v584 = vand.u32 2147483647, %v580
    %v585 = vand.u32 2147483647, %v581
    %v586 = vsub.f32 1.0, %v582
    %v587 = vsub.f32 1.0, %v583
    %v588 = vsub.f32 1.0, %v584
    %v589 = vsub.f32 1.0, %v585
    %v590 = vmax.f32 %v586, 0.0
    %v591 = vmax.f32 %v587, 0.0
    %v592 = vmax.f32 %v588, 0.0
    %v593 = vmax.f32 %v589, 0.0
    %s594 = scalar_lea.vmem %s3, 64
    %v595 = vld [vmem:[%s594] sm:$0xff]
    %v596 = vld [vmem:[%s594 + $0x8] sm:$0xff]
    %v597 = vld [vmem:[%s594 + $0x10] sm:$0xff]
    %v598 = vld [vmem:[%s594 + $0x18] sm:$0xff]
    %v600 = vsel %vm110, %v595, 0
    %v603 = vsel %vm110, %v596, 0
    %v606 = vsel %vm110, %v597, 0
    %v609 = vsel %vm110, %v598, 0
    %611 = vmatprep.subr.mxu0 %v564
    %612 = vmatpush1.msra.mxu0 %v563
    %613 = vmatprep.subr.mxu0 %v566
    %614 = vmatpush1.msra.mxu0 %v565
    %615 = vmatprep.subr.mxu0 0.0
    %616 = vmatpush1.msra.mxu0 0.0
    %617 = vmatprep.subr.mxu0 0.0
    %618 = vmatpush1.msra.mxu0 0.0
    %619 = vmatprep.subr.mxu0 0.0
    %620 = vmatpush1.msra.mxu0 0.0
    %621 = vmatprep.subr.mxu0 0.0
    %622 = vmatpush1.msra.mxu0 0.0
    %623 = vmatprep.subr.mxu0 0.0
    %624 = vmatpush1.msra.mxu0 0.0
    %625 = vmatprep.subr.mxu0 0.0
    %626 = vmatpush1.msra.mxu0 0.0
    %627 = vmatprep.subr.mxu0 0.0
    %628 = vmatpush1.msra.mxu0 0.0
    %629 = vmatprep.subr.mxu0 0.0
    %630 = vmatpush1.msra.mxu0 0.0
    %631 = vmatprep.subr.mxu0 0.0
    %632 = vmatpush1.msra.mxu0 0.0
    %633 = vmatprep.subr.mxu0 0.0
    %634 = vmatpush1.msra.mxu0 0.0
    %635 = vmatprep.subr.mxu0 0.0
    %636 = vmatpush1.msra.mxu0 0.0
    %637 = vmatprep.subr.mxu0 0.0
    %638 = vmatpush1.msra.mxu0 0.0
    %639 = vmatprep.subr.mxu0 0.0
    %640 = vmatpush1.msra.mxu0 0.0
    %641 = vmatprep.subr.mxu0 0.0
    %642 = vmatpush1.msra.mxu0 0.0
    %643 = vmatprep.subr.mxu0 0.0
    %644 = vmatpush1.msra.mxu0 0.0
    %645 = vmatprep.subr.mxu0 0.0
    %646 = vmatpush1.msra.mxu0 0.0
    %647 = vmatprep.subr.mxu0 0.0
    %648 = vmatpush1.msra.mxu0 0.0
    %649 = vmatprep.subr.mxu0 0.0
    %650 = vmatpush1.msra.mxu0 0.0
    %651 = vmatprep.subr.mxu0 0.0
    %652 = vmatpush1.msra.mxu0 0.0
    %653 = vmatprep.subr.mxu0 0.0
    %654 = vmatpush1.msra.mxu0 0.0
    %655 = vmatprep.subr.mxu0 0.0
    %656 = vmatpush1.msra.mxu0 0.0
    %657 = vmatprep.subr.mxu0 0.0
    %658 = vmatpush1.msra.mxu0 0.0
    %659 = vmatprep.subr.mxu0 0.0
    %660 = vmatpush1.msra.mxu0 0.0
    %661 = vmatprep.subr.mxu0 0.0
    %662 = vmatpush1.msra.mxu0 0.0
    %663 = vmatprep.subr.mxu0 0.0
    %664 = vmatpush1.msra.mxu0 0.0
    %665 = vmatprep.subr.mxu0 0.0
    %666 = vmatpush1.msra.mxu0 0.0
    %667 = vmatprep.subr.mxu0 0.0
    %668 = vmatpush1.msra.mxu0 0.0
    %669 = vmatprep.subr.mxu0 0.0
    %670 = vmatpush1.msra.mxu0 0.0
    %671 = vmatprep.subr.mxu0 0.0
    %672 = vmatpush1.msra.mxu0 0.0
    %673 = vmatprep.subr.mxu0 0.0
    %674 = vmatpush1.msra.mxu0 0.0
    %675 = vmatprep.mubr.f32.mxu0 0.0
    %676 = vmatmul.mubr.f32.gmra.mrb[0].mxu0 %v600
    %v677 = vpop.f32.mrb[0].mxu0
    %v678 = vadd.f32 0.0, %v677
    %v679 = vpop.f32.mrb[0].mxu0
    %v680 = vadd.f32 0.0, %v679
    %681 = vmatprep.mubr.f32.mxu0 0.0
    %682 = vmatmul.mubr.f32.gmra.mrb[0].mxu0 %v603
    %v683 = vpop.f32.mrb[0].mxu0
    %v684 = vadd.f32 0.0, %v683
    %v685 = vpop.f32.mrb[0].mxu0
    %v686 = vadd.f32 0.0, %v685
    %687 = vmatprep.mubr.f32.mxu0 0.0
    %688 = vmatmul.mubr.f32.gmra.mrb[0].mxu0 %v606
    %v689 = vpop.f32.mrb[0].mxu0
    %v690 = vadd.f32 0.0, %v689
    %v691 = vpop.f32.mrb[0].mxu0
    %v692 = vadd.f32 0.0, %v691
    %693 = vmatprep.mubr.f32.mxu0 0.0
    %694 = vmatmul.mubr.f32.gmra.mrb[0].mxu0 %v609
    %v695 = vpop.f32.mrb[0].mxu0
    %v696 = vadd.f32 0.0, %v695
    %v697 = vpop.f32.mrb[0].mxu0
    %v698 = vadd.f32 0.0, %v697
    %699 = vdwg.mxu0
    %v700 = vmul.f32 %v678, %v590
    %v701 = vmul.f32 %v680, %v591
    %v702 = vmul.f32 %v684, %v592
    %v703 = vmul.f32 %v686, %v593
    %v704 = vmul.f32 %v690, %v590
    %v705 = vmul.f32 %v692, %v591
    %v706 = vmul.f32 %v696, %v592
    %v707 = vmul.f32 %v698, %v593
    %v708 = vadd.f32 %v700, %v702
    %v709 = vrot.slane %v708, 4
    %v710 = vadd.f32 %v708, %v709
    %v711 = vrot.slane %v710, 2
    %v712 = vadd.f32 %v710, %v711
    %v713 = vrot.slane %v712, 1
    %v714 = vadd.f32 %v712, %v713
    %v715 = vadd.f32 %v701, %v703
    %v716 = vrot.slane %v715, 4
    %v717 = vadd.f32 %v715, %v716
    %v718 = vrot.slane %v717, 2
    %v719 = vadd.f32 %v717, %v718
    %v720 = vrot.slane %v719, 1
    %v721 = vadd.f32 %v719, %v720
    %v722 = vadd.f32 %v704, %v706
    %v723 = vrot.slane %v722, 4
    %v724 = vadd.f32 %v722, %v723
    %v725 = vrot.slane %v724, 2
    %v726 = vadd.f32 %v724, %v725
    %v727 = vrot.slane %v726, 1
    %v728 = vadd.f32 %v726, %v727
    %v729 = vadd.f32 %v705, %v707
    %v730 = vrot.slane %v729, 4
    %v731 = vadd.f32 %v729, %v730
    %v732 = vrot.slane %v731, 2
    %v733 = vadd.f32 %v731, %v732
    %v734 = vrot.slane %v733, 1
    %v735 = vadd.f32 %v733, %v734
    %v740 = vcombine.low %v714, %v721
    %v742 = vunpack.c.l.s4 1983009808
    %v743 = vunpack.c.0.s8 %v742
    %v744 = vlaneseq
    %v745 = vshrl.u32 %v744, 7
    %v746 = vsub.s32 %v743, %v745
    %v747 = vrot.slane %v740, %v746
    %v748 = vcombine.low %v728, %v735
    %v750 = vunpack.c.l.s4 1983009808
    %v751 = vunpack.c.0.s8 %v750
    %v752 = vlaneseq
    %v753 = vshrl.u32 %v752, 7
    %v754 = vsub.s32 %v751, %v753
    %v755 = vrot.slane %v748, %v754
    %v756 = vsel %vm268, %v747, %v747
    %v757 = vsel %vm270, %v747, %v756
    %v758 = vrot.slane %v755, 7
    %v759 = vsel %vm273, %v758, %v757
    %v760 = vsel %vm275, %v758, %v759
    %v761 = vsel %vm277, %v758, %v760
    %v762 = vsel %vm279, %v758, %v761
    %s764 = scalar_lea.vmem [#allocation5], 8
    %765 = vst [vmem:[%s764] sm:$0xf] %v762
    %s766 = sadd.s32 %s283, 3
    %s767 = smul.u32 %s766, 2
    %s768 = sld [smem:[#allocation2 + %s767]]
    %s769 = sadd.s32 %s767, 1
    %s770 = sld [smem:[#allocation2 + %s769]]
    %v771 = vstv %s768
    %v772 = vmul.f32 %v771, %v31
    %v773 = vstv %s770
    %v774 = vmul.f32 %v773, %v32
    %v775 = vsub.f32 %v772, %v774
    %v776 = vadd.f32 %v775, 7.5
    %v777 = vmul.f32 %v773, %v31
    %v778 = vmul.f32 %v771, %v32
    %v779 = vadd.f32 %v777, %v778
    %v780 = vadd.f32 %v779, 7.5
    %v782 = vlaneseq
    %v783 = vshrl.u32 %v782, 7
    %v784 = vsub.s32 0, %v783
    %v785 = vrot.slane %v776, %v784
    %v786 = vlaneseq
    %v787 = vshrl.u32 %v786, 7
    %v788 = vsub.s32 1, %v787
    %v789 = vrot.slane %v776, %v788
    %v792 = vsub.f32 %v36, %v785
    %v793 = vsub.f32 %v36, %v789
    %v794 = vsub.f32 %v37, %v785
    %v795 = vsub.f32 %v37, %v789
    %v796 = vand.u32 2147483647, %v792
    %v797 = vand.u32 2147483647, %v793
    %v798 = vand.u32 2147483647, %v794
    %v799 = vand.u32 2147483647, %v795
    %v800 = vsub.f32 1.0, %v796
    %v801 = vsub.f32 1.0, %v797
    %v802 = vsub.f32 1.0, %v798
    %v803 = vsub.f32 1.0, %v799
    %v804 = vmax.f32 %v800, 0.0
    %v805 = vmax.f32 %v801, 0.0
    %v806 = vmax.f32 %v802, 0.0
    %v807 = vmax.f32 %v803, 0.0
    %v809 = vlaneseq
    %v810 = vshrl.u32 %v809, 7
    %v811 = vsub.s32 0, %v810
    %v812 = vrot.slane %v780, %v811
    %v813 = vlaneseq
    %v814 = vshrl.u32 %v813, 7
    %v815 = vsub.s32 1, %v814
    %v816 = vrot.slane %v780, %v815
    %v819 = vsub.f32 %v36, %v812
    %v820 = vsub.f32 %v36, %v816
    %v821 = vsub.f32 %v37, %v812
    %v822 = vsub.f32 %v37, %v816
    %v823 = vand.u32 2147483647, %v819
    %v824 = vand.u32 2147483647, %v820
    %v825 = vand.u32 2147483647, %v821
    %v826 = vand.u32 2147483647, %v822
    %v827 = vsub.f32 1.0, %v823
    %v828 = vsub.f32 1.0, %v824
    %v829 = vsub.f32 1.0, %v825
    %v830 = vsub.f32 1.0, %v826
    %v831 = vmax.f32 %v827, 0.0
    %v832 = vmax.f32 %v828, 0.0
    %v833 = vmax.f32 %v829, 0.0
    %v834 = vmax.f32 %v830, 0.0
    %s835 = scalar_lea.vmem %s3, 96
    %v836 = vld [vmem:[%s835] sm:$0xff]
    %v837 = vld [vmem:[%s835 + $0x8] sm:$0xff]
    %v838 = vld [vmem:[%s835 + $0x10] sm:$0xff]
    %v839 = vld [vmem:[%s835 + $0x18] sm:$0xff]
    %v841 = vsel %vm110, %v836, 0
    %v844 = vsel %vm110, %v837, 0
    %v847 = vsel %vm110, %v838, 0
    %v850 = vsel %vm110, %v839, 0
    %852 = vmatprep.subr.mxu0 %v805
    %853 = vmatpush1.msra.mxu0 %v804
    %854 = vmatprep.subr.mxu0 %v807
    %855 = vmatpush1.msra.mxu0 %v806
    %856 = vmatprep.subr.mxu0 0.0
    %857 = vmatpush1.msra.mxu0 0.0
    %858 = vmatprep.subr.mxu0 0.0
    %859 = vmatpush1.msra.mxu0 0.0
    %860 = vmatprep.subr.mxu0 0.0
    %861 = vmatpush1.msra.mxu0 0.0
    %862 = vmatprep.subr.mxu0 0.0
    %863 = vmatpush1.msra.mxu0 0.0
    %864 = vmatprep.subr.mxu0 0.0
    %865 = vmatpush1.msra.mxu0 0.0
    %866 = vmatprep.subr.mxu0 0.0
    %867 = vmatpush1.msra.mxu0 0.0
    %868 = vmatprep.subr.mxu0 0.0
    %869 = vmatpush1.msra.mxu0 0.0
    %870 = vmatprep.subr.mxu0 0.0
    %871 = vmatpush1.msra.mxu0 0.0
    %872 = vmatprep.subr.mxu0 0.0
    %873 = vmatpush1.msra.mxu0 0.0
    %874 = vmatprep.subr.mxu0 0.0
    %875 = vmatpush1.msra.mxu0 0.0
    %876 = vmatprep.subr.mxu0 0.0
    %877 = vmatpush1.msra.mxu0 0.0
    %878 = vmatprep.subr.mxu0 0.0
    %879 = vmatpush1.msra.mxu0 0.0
    %880 = vmatprep.subr.mxu0 0.0
    %881 = vmatpush1.msra.mxu0 0.0
    %882 = vmatprep.subr.mxu0 0.0
    %883 = vmatpush1.msra.mxu0 0.0
    %884 = vmatprep.subr.mxu0 0.0
    %885 = vmatpush1.msra.mxu0 0.0
    %886 = vmatprep.subr.mxu0 0.0
    %887 = vmatpush1.msra.mxu0 0.0
    %888 = vmatprep.subr.mxu0 0.0
    %889 = vmatpush1.msra.mxu0 0.0
    %890 = vmatprep.subr.mxu0 0.0
    %891 = vmatpush1.msra.mxu0 0.0
    %892 = vmatprep.subr.mxu0 0.0
    %893 = vmatpush1.msra.mxu0 0.0
    %894 = vmatprep.subr.mxu0 0.0
    %895 = vmatpush1.msra.mxu0 0.0
    %896 = vmatprep.subr.mxu0 0.0
    %897 = vmatpush1.msra.mxu0 0.0
    %898 = vmatprep.subr.mxu0 0.0
    %899 = vmatpush1.msra.mxu0 0.0
    %900 = vmatprep.subr.mxu0 0.0
    %901 = vmatpush1.msra.mxu0 0.0
    %902 = vmatprep.subr.mxu0 0.0
    %903 = vmatpush1.msra.mxu0 0.0
    %904 = vmatprep.subr.mxu0 0.0
    %905 = vmatpush1.msra.mxu0 0.0
    %906 = vmatprep.subr.mxu0 0.0
    %907 = vmatpush1.msra.mxu0 0.0
    %908 = vmatprep.subr.mxu0 0.0
    %909 = vmatpush1.msra.mxu0 0.0
    %910 = vmatprep.subr.mxu0 0.0
    %911 = vmatpush1.msra.mxu0 0.0
    %912 = vmatprep.subr.mxu0 0.0
    %913 = vmatpush1.msra.mxu0 0.0
    %914 = vmatprep.subr.mxu0 0.0
    %915 = vmatpush1.msra.mxu0 0.0
    %916 = vmatprep.mubr.f32.mxu0 0.0
    %917 = vmatmul.mubr.f32.gmra.mrb[0].mxu0 %v841
    %v918 = vpop.f32.mrb[0].mxu0
    %v919 = vadd.f32 0.0, %v918
    %v920 = vpop.f32.mrb[0].mxu0
    %v921 = vadd.f32 0.0, %v920
    %922 = vmatprep.mubr.f32.mxu0 0.0
    %923 = vmatmul.mubr.f32.gmra.mrb[0].mxu0 %v844
    %v924 = vpop.f32.mrb[0].mxu0
    %v925 = vadd.f32 0.0, %v924
    %v926 = vpop.f32.mrb[0].mxu0
    %v927 = vadd.f32 0.0, %v926
    %928 = vmatprep.mubr.f32.mxu0 0.0
    %929 = vmatmul.mubr.f32.gmra.mrb[0].mxu0 %v847
    %v930 = vpop.f32.mrb[0].mxu0
    %v931 = vadd.f32 0.0, %v930
    %v932 = vpop.f32.mrb[0].mxu0
    %v933 = vadd.f32 0.0, %v932
    %934 = vmatprep.mubr.f32.mxu0 0.0
    %935 = vmatmul.mubr.f32.gmra.mrb[0].mxu0 %v850
    %v936 = vpop.f32.mrb[0].mxu0
    %v937 = vadd.f32 0.0, %v936
    %v938 = vpop.f32.mrb[0].mxu0
    %v939 = vadd.f32 0.0, %v938
    %940 = vdwg.mxu0
    %v941 = vmul.f32 %v919, %v831
    %v942 = vmul.f32 %v921, %v832
    %v943 = vmul.f32 %v925, %v833
    %v944 = vmul.f32 %v927, %v834
    %v945 = vmul.f32 %v931, %v831
    %v946 = vmul.f32 %v933, %v832
    %v947 = vmul.f32 %v937, %v833
    %v948 = vmul.f32 %v939, %v834
    %v949 = vadd.f32 %v941, %v943
    %v950 = vrot.slane %v949, 4
    %v951 = vadd.f32 %v949, %v950
    %v952 = vrot.slane %v951, 2
    %v953 = vadd.f32 %v951, %v952
    %v954 = vrot.slane %v953, 1
    %v955 = vadd.f32 %v953, %v954
    %v956 = vadd.f32 %v942, %v944
    %v957 = vrot.slane %v956, 4
    %v958 = vadd.f32 %v956, %v957
    %v959 = vrot.slane %v958, 2
    %v960 = vadd.f32 %v958, %v959
    %v961 = vrot.slane %v960, 1
    %v962 = vadd.f32 %v960, %v961
    %v963 = vadd.f32 %v945, %v947
    %v964 = vrot.slane %v963, 4
    %v965 = vadd.f32 %v963, %v964
    %v966 = vrot.slane %v965, 2
    %v967 = vadd.f32 %v965, %v966
    %v968 = vrot.slane %v967, 1
    %v969 = vadd.f32 %v967, %v968
    %v970 = vadd.f32 %v946, %v948
    %v971 = vrot.slane %v970, 4
    %v972 = vadd.f32 %v970, %v971
    %v973 = vrot.slane %v972, 2
    %v974 = vadd.f32 %v972, %v973
    %v975 = vrot.slane %v974, 1
    %v976 = vadd.f32 %v974, %v975
    %v981 = vcombine.low %v955, %v962
    %v983 = vunpack.c.l.s4 1983009808
    %v984 = vunpack.c.0.s8 %v983
    %v985 = vlaneseq
    %v986 = vshrl.u32 %v985, 7
    %v987 = vsub.s32 %v984, %v986
    %v988 = vrot.slane %v981, %v987
    %v989 = vcombine.low %v969, %v976
    %v991 = vunpack.c.l.s4 1983009808
    %v992 = vunpack.c.0.s8 %v991
    %v993 = vlaneseq
    %v994 = vshrl.u32 %v993, 7
    %v995 = vsub.s32 %v992, %v994
    %v996 = vrot.slane %v989, %v995
    %v997 = vsel %vm268, %v988, %v988
    %v998 = vsel %vm270, %v988, %v997
    %v999 = vrot.slane %v996, 7
    %v1000 = vsel %vm273, %v999, %v998
    %v1001 = vsel %vm275, %v999, %v1000
    %v1002 = vsel %vm277, %v999, %v1001
    %v1003 = vsel %vm279, %v999, %v1002
    %s1005 = scalar_lea.vmem [#allocation5], 12
    %1006 = vst [vmem:[%s1005] sm:$0xf] %v1003
    %s1007 = sadd.s32 %s283, 4
    %s1008 = smul.u32 %s1007, 2
    %s1009 = sld [smem:[#allocation2 + %s1008]]
    %s1010 = sadd.s32 %s1008, 1
    %s1011 = sld [smem:[#allocation2 + %s1010]]
    %v1012 = vstv %s1009
    %v1013 = vmul.f32 %v1012, %v31
    %v1014 = vstv %s1011
    %v1015 = vmul.f32 %v1014, %v32
    %v1016 = vsub.f32 %v1013, %v1015
    %v1017 = vadd.f32 %v1016, 7.5
    %v1018 = vmul.f32 %v1014, %v31
    %v1019 = vmul.f32 %v1012, %v32
    %v1020 = vadd.f32 %v1018, %v1019
    %v1021 = vadd.f32 %v1020, 7.5
    %v1023 = vlaneseq
    %v1024 = vshrl.u32 %v1023, 7
    %v1025 = vsub.s32 0, %v1024
    %v1026 = vrot.slane %v1017, %v1025
    %v1027 = vlaneseq
    %v1028 = vshrl.u32 %v1027, 7
    %v1029 = vsub.s32 1, %v1028
    %v1030 = vrot.slane %v1017, %v1029
    %v1033 = vsub.f32 %v36, %v1026
    %v1034 = vsub.f32 %v36, %v1030
    %v1035 = vsub.f32 %v37, %v1026
    %v1036 = vsub.f32 %v37, %v1030
    %v1037 = vand.u32 2147483647, %v1033
    %v1038 = vand.u32 2147483647, %v1034
    %v1039 = vand.u32 2147483647, %v1035
    %v1040 = vand.u32 2147483647, %v1036
    %v1041 = vsub.f32 1.0, %v1037
    %v1042 = vsub.f32 1.0, %v1038
    %v1043 = vsub.f32 1.0, %v1039
    %v1044 = vsub.f32 1.0, %v1040
    %v1045 = vmax.f32 %v1041, 0.0
    %v1046 = vmax.f32 %v1042, 0.0
    %v1047 = vmax.f32 %v1043, 0.0
    %v1048 = vmax.f32 %v1044, 0.0
    %v1050 = vlaneseq
    %v1051 = vshrl.u32 %v1050, 7
    %v1052 = vsub.s32 0, %v1051
    %v1053 = vrot.slane %v1021, %v1052
    %v1054 = vlaneseq
    %v1055 = vshrl.u32 %v1054, 7
    %v1056 = vsub.s32 1, %v1055
    %v1057 = vrot.slane %v1021, %v1056
    %v1060 = vsub.f32 %v36, %v1053
    %v1061 = vsub.f32 %v36, %v1057
    %v1062 = vsub.f32 %v37, %v1053
    %v1063 = vsub.f32 %v37, %v1057
    %v1064 = vand.u32 2147483647, %v1060
    %v1065 = vand.u32 2147483647, %v1061
    %v1066 = vand.u32 2147483647, %v1062
    %v1067 = vand.u32 2147483647, %v1063
    %v1068 = vsub.f32 1.0, %v1064
    %v1069 = vsub.f32 1.0, %v1065
    %v1070 = vsub.f32 1.0, %v1066
    %v1071 = vsub.f32 1.0, %v1067
    %v1072 = vmax.f32 %v1068, 0.0
    %v1073 = vmax.f32 %v1069, 0.0
    %v1074 = vmax.f32 %v1070, 0.0
    %v1075 = vmax.f32 %v1071, 0.0
    %s1076 = scalar_lea.vmem %s3, 128
    %v1077 = vld [vmem:[%s1076] sm:$0xff]
    %v1078 = vld [vmem:[%s1076 + $0x8] sm:$0xff]
    %v1079 = vld [vmem:[%s1076 + $0x10] sm:$0xff]
    %v1080 = vld [vmem:[%s1076 + $0x18] sm:$0xff]
    %v1082 = vsel %vm110, %v1077, 0
    %v1085 = vsel %vm110, %v1078, 0
    %v1088 = vsel %vm110, %v1079, 0
    %v1091 = vsel %vm110, %v1080, 0
    %1093 = vmatprep.subr.mxu0 %v1046
    %1094 = vmatpush1.msra.mxu0 %v1045
    %1095 = vmatprep.subr.mxu0 %v1048
    %1096 = vmatpush1.msra.mxu0 %v1047
    %1097 = vmatprep.subr.mxu0 0.0
    %1098 = vmatpush1.msra.mxu0 0.0
    %1099 = vmatprep.subr.mxu0 0.0
    %1100 = vmatpush1.msra.mxu0 0.0
    %1101 = vmatprep.subr.mxu0 0.0
    %1102 = vmatpush1.msra.mxu0 0.0
    %1103 = vmatprep.subr.mxu0 0.0
    %1104 = vmatpush1.msra.mxu0 0.0
    %1105 = vmatprep.subr.mxu0 0.0
    %1106 = vmatpush1.msra.mxu0 0.0
    %1107 = vmatprep.subr.mxu0 0.0
    %1108 = vmatpush1.msra.mxu0 0.0
    %1109 = vmatprep.subr.mxu0 0.0
    %1110 = vmatpush1.msra.mxu0 0.0
    %1111 = vmatprep.subr.mxu0 0.0
    %1112 = vmatpush1.msra.mxu0 0.0
    %1113 = vmatprep.subr.mxu0 0.0
    %1114 = vmatpush1.msra.mxu0 0.0
    %1115 = vmatprep.subr.mxu0 0.0
    %1116 = vmatpush1.msra.mxu0 0.0
    %1117 = vmatprep.subr.mxu0 0.0
    %1118 = vmatpush1.msra.mxu0 0.0
    %1119 = vmatprep.subr.mxu0 0.0
    %1120 = vmatpush1.msra.mxu0 0.0
    %1121 = vmatprep.subr.mxu0 0.0
    %1122 = vmatpush1.msra.mxu0 0.0
    %1123 = vmatprep.subr.mxu0 0.0
    %1124 = vmatpush1.msra.mxu0 0.0
    %1125 = vmatprep.subr.mxu0 0.0
    %1126 = vmatpush1.msra.mxu0 0.0
    %1127 = vmatprep.subr.mxu0 0.0
    %1128 = vmatpush1.msra.mxu0 0.0
    %1129 = vmatprep.subr.mxu0 0.0
    %1130 = vmatpush1.msra.mxu0 0.0
    %1131 = vmatprep.subr.mxu0 0.0
    %1132 = vmatpush1.msra.mxu0 0.0
    %1133 = vmatprep.subr.mxu0 0.0
    %1134 = vmatpush1.msra.mxu0 0.0
    %1135 = vmatprep.subr.mxu0 0.0
    %1136 = vmatpush1.msra.mxu0 0.0
    %1137 = vmatprep.subr.mxu0 0.0
    %1138 = vmatpush1.msra.mxu0 0.0
    %1139 = vmatprep.subr.mxu0 0.0
    %1140 = vmatpush1.msra.mxu0 0.0
    %1141 = vmatprep.subr.mxu0 0.0
    %1142 = vmatpush1.msra.mxu0 0.0
    %1143 = vmatprep.subr.mxu0 0.0
    %1144 = vmatpush1.msra.mxu0 0.0
    %1145 = vmatprep.subr.mxu0 0.0
    %1146 = vmatpush1.msra.mxu0 0.0
    %1147 = vmatprep.subr.mxu0 0.0
    %1148 = vmatpush1.msra.mxu0 0.0
    %1149 = vmatprep.subr.mxu0 0.0
    %1150 = vmatpush1.msra.mxu0 0.0
    %1151 = vmatprep.subr.mxu0 0.0
    %1152 = vmatpush1.msra.mxu0 0.0
    %1153 = vmatprep.subr.mxu0 0.0
    %1154 = vmatpush1.msra.mxu0 0.0
    %1155 = vmatprep.subr.mxu0 0.0
    %1156 = vmatpush1.msra.mxu0 0.0
    %1157 = vmatprep.mubr.f32.mxu0 0.0
    %1158 = vmatmul.mubr.f32.gmra.mrb[0].mxu0 %v1082
    %v1159 = vpop.f32.mrb[0].mxu0
    %v1160 = vadd.f32 0.0, %v1159
    %v1161 = vpop.f32.mrb[0].mxu0
    %v1162 = vadd.f32 0.0, %v1161
    %1163 = vmatprep.mubr.f32.mxu0 0.0
    %1164 = vmatmul.mubr.f32.gmra.mrb[0].mxu0 %v1085
    %v1165 = vpop.f32.mrb[0].mxu0
    %v1166 = vadd.f32 0.0, %v1165
    %v1167 = vpop.f32.mrb[0].mxu0
    %v1168 = vadd.f32 0.0, %v1167
    %1169 = vmatprep.mubr.f32.mxu0 0.0
    %1170 = vmatmul.mubr.f32.gmra.mrb[0].mxu0 %v1088
    %v1171 = vpop.f32.mrb[0].mxu0
    %v1172 = vadd.f32 0.0, %v1171
    %v1173 = vpop.f32.mrb[0].mxu0
    %v1174 = vadd.f32 0.0, %v1173
    %1175 = vmatprep.mubr.f32.mxu0 0.0
    %1176 = vmatmul.mubr.f32.gmra.mrb[0].mxu0 %v1091
    %v1177 = vpop.f32.mrb[0].mxu0
    %v1178 = vadd.f32 0.0, %v1177
    %v1179 = vpop.f32.mrb[0].mxu0
    %v1180 = vadd.f32 0.0, %v1179
    %1181 = vdwg.mxu0
    %v1182 = vmul.f32 %v1160, %v1072
    %v1183 = vmul.f32 %v1162, %v1073
    %v1184 = vmul.f32 %v1166, %v1074
    %v1185 = vmul.f32 %v1168, %v1075
    %v1186 = vmul.f32 %v1172, %v1072
    %v1187 = vmul.f32 %v1174, %v1073
    %v1188 = vmul.f32 %v1178, %v1074
    %v1189 = vmul.f32 %v1180, %v1075
    %v1190 = vadd.f32 %v1182, %v1184
    %v1191 = vrot.slane %v1190, 4
    %v1192 = vadd.f32 %v1190, %v1191
    %v1193 = vrot.slane %v1192, 2
    %v1194 = vadd.f32 %v1192, %v1193
    %v1195 = vrot.slane %v1194, 1
    %v1196 = vadd.f32 %v1194, %v1195
    %v1197 = vadd.f32 %v1183, %v1185
    %v1198 = vrot.slane %v1197, 4
    %v1199 = vadd.f32 %v1197, %v1198
    %v1200 = vrot.slane %v1199, 2
    %v1201 = vadd.f32 %v1199, %v1200
    %v1202 = vrot.slane %v1201, 1
    %v1203 = vadd.f32 %v1201, %v1202
    %v1204 = vadd.f32 %v1186, %v1188
    %v1205 = vrot.slane %v1204, 4
    %v1206 = vadd.f32 %v1204, %v1205
    %v1207 = vrot.slane %v1206, 2
    %v1208 = vadd.f32 %v1206, %v1207
    %v1209 = vrot.slane %v1208, 1
    %v1210 = vadd.f32 %v1208, %v1209
    %v1211 = vadd.f32 %v1187, %v1189
    %v1212 = vrot.slane %v1211, 4
    %v1213 = vadd.f32 %v1211, %v1212
    %v1214 = vrot.slane %v1213, 2
    %v1215 = vadd.f32 %v1213, %v1214
    %v1216 = vrot.slane %v1215, 1
    %v1217 = vadd.f32 %v1215, %v1216
    %v1222 = vcombine.low %v1196, %v1203
    %v1224 = vunpack.c.l.s4 1983009808
    %v1225 = vunpack.c.0.s8 %v1224
    %v1226 = vlaneseq
    %v1227 = vshrl.u32 %v1226, 7
    %v1228 = vsub.s32 %v1225, %v1227
    %v1229 = vrot.slane %v1222, %v1228
    %v1230 = vcombine.low %v1210, %v1217
    %v1232 = vunpack.c.l.s4 1983009808
    %v1233 = vunpack.c.0.s8 %v1232
    %v1234 = vlaneseq
    %v1235 = vshrl.u32 %v1234, 7
    %v1236 = vsub.s32 %v1233, %v1235
    %v1237 = vrot.slane %v1230, %v1236
    %v1238 = vsel %vm268, %v1229, %v1229
    %v1239 = vsel %vm270, %v1229, %v1238
    %v1240 = vrot.slane %v1237, 7
    %v1241 = vsel %vm273, %v1240, %v1239
    %v1242 = vsel %vm275, %v1240, %v1241
    %v1243 = vsel %vm277, %v1240, %v1242
    %v1244 = vsel %vm279, %v1240, %v1243
    %s1246 = scalar_lea.vmem [#allocation5], 16
    %1247 = vst [vmem:[%s1246] sm:$0xf] %v1244
    %s1248 = sadd.s32 %s283, 5
    %s1249 = smul.u32 %s1248, 2
    %s1250 = sld [smem:[#allocation2 + %s1249]]
    %s1251 = sadd.s32 %s1249, 1
    %s1252 = sld [smem:[#allocation2 + %s1251]]
    %v1253 = vstv %s1250
    %v1254 = vmul.f32 %v1253, %v31
    %v1255 = vstv %s1252
    %v1256 = vmul.f32 %v1255, %v32
    %v1257 = vsub.f32 %v1254, %v1256
    %v1258 = vadd.f32 %v1257, 7.5
    %v1259 = vmul.f32 %v1255, %v31
    %v1260 = vmul.f32 %v1253, %v32
    %v1261 = vadd.f32 %v1259, %v1260
    %v1262 = vadd.f32 %v1261, 7.5
    %v1264 = vlaneseq
    %v1265 = vshrl.u32 %v1264, 7
    %v1266 = vsub.s32 0, %v1265
    %v1267 = vrot.slane %v1258, %v1266
    %v1268 = vlaneseq
    %v1269 = vshrl.u32 %v1268, 7
    %v1270 = vsub.s32 1, %v1269
    %v1271 = vrot.slane %v1258, %v1270
    %v1274 = vsub.f32 %v36, %v1267
    %v1275 = vsub.f32 %v36, %v1271
    %v1276 = vsub.f32 %v37, %v1267
    %v1277 = vsub.f32 %v37, %v1271
    %v1278 = vand.u32 2147483647, %v1274
    %v1279 = vand.u32 2147483647, %v1275
    %v1280 = vand.u32 2147483647, %v1276
    %v1281 = vand.u32 2147483647, %v1277
    %v1282 = vsub.f32 1.0, %v1278
    %v1283 = vsub.f32 1.0, %v1279
    %v1284 = vsub.f32 1.0, %v1280
    %v1285 = vsub.f32 1.0, %v1281
    %v1286 = vmax.f32 %v1282, 0.0
    %v1287 = vmax.f32 %v1283, 0.0
    %v1288 = vmax.f32 %v1284, 0.0
    %v1289 = vmax.f32 %v1285, 0.0
    %v1291 = vlaneseq
    %v1292 = vshrl.u32 %v1291, 7
    %v1293 = vsub.s32 0, %v1292
    %v1294 = vrot.slane %v1262, %v1293
    %v1295 = vlaneseq
    %v1296 = vshrl.u32 %v1295, 7
    %v1297 = vsub.s32 1, %v1296
    %v1298 = vrot.slane %v1262, %v1297
    %v1301 = vsub.f32 %v36, %v1294
    %v1302 = vsub.f32 %v36, %v1298
    %v1303 = vsub.f32 %v37, %v1294
    %v1304 = vsub.f32 %v37, %v1298
    %v1305 = vand.u32 2147483647, %v1301
    %v1306 = vand.u32 2147483647, %v1302
    %v1307 = vand.u32 2147483647, %v1303
    %v1308 = vand.u32 2147483647, %v1304
    %v1309 = vsub.f32 1.0, %v1305
    %v1310 = vsub.f32 1.0, %v1306
    %v1311 = vsub.f32 1.0, %v1307
    %v1312 = vsub.f32 1.0, %v1308
    %v1313 = vmax.f32 %v1309, 0.0
    %v1314 = vmax.f32 %v1310, 0.0
    %v1315 = vmax.f32 %v1311, 0.0
    %v1316 = vmax.f32 %v1312, 0.0
    %s1317 = scalar_lea.vmem %s3, 160
    %v1318 = vld [vmem:[%s1317] sm:$0xff]
    %v1319 = vld [vmem:[%s1317 + $0x8] sm:$0xff]
    %v1320 = vld [vmem:[%s1317 + $0x10] sm:$0xff]
    %v1321 = vld [vmem:[%s1317 + $0x18] sm:$0xff]
    %v1323 = vsel %vm110, %v1318, 0
    %v1326 = vsel %vm110, %v1319, 0
    %v1329 = vsel %vm110, %v1320, 0
    %v1332 = vsel %vm110, %v1321, 0
    %1334 = vmatprep.subr.mxu0 %v1287
    %1335 = vmatpush1.msra.mxu0 %v1286
    %1336 = vmatprep.subr.mxu0 %v1289
    %1337 = vmatpush1.msra.mxu0 %v1288
    %1338 = vmatprep.subr.mxu0 0.0
    %1339 = vmatpush1.msra.mxu0 0.0
    %1340 = vmatprep.subr.mxu0 0.0
    %1341 = vmatpush1.msra.mxu0 0.0
    %1342 = vmatprep.subr.mxu0 0.0
    %1343 = vmatpush1.msra.mxu0 0.0
    %1344 = vmatprep.subr.mxu0 0.0
    %1345 = vmatpush1.msra.mxu0 0.0
    %1346 = vmatprep.subr.mxu0 0.0
    %1347 = vmatpush1.msra.mxu0 0.0
    %1348 = vmatprep.subr.mxu0 0.0
    %1349 = vmatpush1.msra.mxu0 0.0
    %1350 = vmatprep.subr.mxu0 0.0
    %1351 = vmatpush1.msra.mxu0 0.0
    %1352 = vmatprep.subr.mxu0 0.0
    %1353 = vmatpush1.msra.mxu0 0.0
    %1354 = vmatprep.subr.mxu0 0.0
    %1355 = vmatpush1.msra.mxu0 0.0
    %1356 = vmatprep.subr.mxu0 0.0
    %1357 = vmatpush1.msra.mxu0 0.0
    %1358 = vmatprep.subr.mxu0 0.0
    %1359 = vmatpush1.msra.mxu0 0.0
    %1360 = vmatprep.subr.mxu0 0.0
    %1361 = vmatpush1.msra.mxu0 0.0
    %1362 = vmatprep.subr.mxu0 0.0
    %1363 = vmatpush1.msra.mxu0 0.0
    %1364 = vmatprep.subr.mxu0 0.0
    %1365 = vmatpush1.msra.mxu0 0.0
    %1366 = vmatprep.subr.mxu0 0.0
    %1367 = vmatpush1.msra.mxu0 0.0
    %1368 = vmatprep.subr.mxu0 0.0
    %1369 = vmatpush1.msra.mxu0 0.0
    %1370 = vmatprep.subr.mxu0 0.0
    %1371 = vmatpush1.msra.mxu0 0.0
    %1372 = vmatprep.subr.mxu0 0.0
    %1373 = vmatpush1.msra.mxu0 0.0
    %1374 = vmatprep.subr.mxu0 0.0
    %1375 = vmatpush1.msra.mxu0 0.0
    %1376 = vmatprep.subr.mxu0 0.0
    %1377 = vmatpush1.msra.mxu0 0.0
    %1378 = vmatprep.subr.mxu0 0.0
    %1379 = vmatpush1.msra.mxu0 0.0
    %1380 = vmatprep.subr.mxu0 0.0
    %1381 = vmatpush1.msra.mxu0 0.0
    %1382 = vmatprep.subr.mxu0 0.0
    %1383 = vmatpush1.msra.mxu0 0.0
    %1384 = vmatprep.subr.mxu0 0.0
    %1385 = vmatpush1.msra.mxu0 0.0
    %1386 = vmatprep.subr.mxu0 0.0
    %1387 = vmatpush1.msra.mxu0 0.0
    %1388 = vmatprep.subr.mxu0 0.0
    %1389 = vmatpush1.msra.mxu0 0.0
    %1390 = vmatprep.subr.mxu0 0.0
    %1391 = vmatpush1.msra.mxu0 0.0
    %1392 = vmatprep.subr.mxu0 0.0
    %1393 = vmatpush1.msra.mxu0 0.0
    %1394 = vmatprep.subr.mxu0 0.0
    %1395 = vmatpush1.msra.mxu0 0.0
    %1396 = vmatprep.subr.mxu0 0.0
    %1397 = vmatpush1.msra.mxu0 0.0
    %1398 = vmatprep.mubr.f32.mxu0 0.0
    %1399 = vmatmul.mubr.f32.gmra.mrb[0].mxu0 %v1323
    %v1400 = vpop.f32.mrb[0].mxu0
    %v1401 = vadd.f32 0.0, %v1400
    %v1402 = vpop.f32.mrb[0].mxu0
    %v1403 = vadd.f32 0.0, %v1402
    %1404 = vmatprep.mubr.f32.mxu0 0.0
    %1405 = vmatmul.mubr.f32.gmra.mrb[0].mxu0 %v1326
    %v1406 = vpop.f32.mrb[0].mxu0
    %v1407 = vadd.f32 0.0, %v1406
    %v1408 = vpop.f32.mrb[0].mxu0
    %v1409 = vadd.f32 0.0, %v1408
    %1410 = vmatprep.mubr.f32.mxu0 0.0
    %1411 = vmatmul.mubr.f32.gmra.mrb[0].mxu0 %v1329
    %v1412 = vpop.f32.mrb[0].mxu0
    %v1413 = vadd.f32 0.0, %v1412
    %v1414 = vpop.f32.mrb[0].mxu0
    %v1415 = vadd.f32 0.0, %v1414
    %1416 = vmatprep.mubr.f32.mxu0 0.0
    %1417 = vmatmul.mubr.f32.gmra.mrb[0].mxu0 %v1332
    %v1418 = vpop.f32.mrb[0].mxu0
    %v1419 = vadd.f32 0.0, %v1418
    %v1420 = vpop.f32.mrb[0].mxu0
    %v1421 = vadd.f32 0.0, %v1420
    %1422 = vdwg.mxu0
    %v1423 = vmul.f32 %v1401, %v1313
    %v1424 = vmul.f32 %v1403, %v1314
    %v1425 = vmul.f32 %v1407, %v1315
    %v1426 = vmul.f32 %v1409, %v1316
    %v1427 = vmul.f32 %v1413, %v1313
    %v1428 = vmul.f32 %v1415, %v1314
    %v1429 = vmul.f32 %v1419, %v1315
    %v1430 = vmul.f32 %v1421, %v1316
    %v1431 = vadd.f32 %v1423, %v1425
    %v1432 = vrot.slane %v1431, 4
    %v1433 = vadd.f32 %v1431, %v1432
    %v1434 = vrot.slane %v1433, 2
    %v1435 = vadd.f32 %v1433, %v1434
    %v1436 = vrot.slane %v1435, 1
    %v1437 = vadd.f32 %v1435, %v1436
    %v1438 = vadd.f32 %v1424, %v1426
    %v1439 = vrot.slane %v1438, 4
    %v1440 = vadd.f32 %v1438, %v1439
    %v1441 = vrot.slane %v1440, 2
    %v1442 = vadd.f32 %v1440, %v1441
    %v1443 = vrot.slane %v1442, 1
    %v1444 = vadd.f32 %v1442, %v1443
    %v1445 = vadd.f32 %v1427, %v1429
    %v1446 = vrot.slane %v1445, 4
    %v1447 = vadd.f32 %v1445, %v1446
    %v1448 = vrot.slane %v1447, 2
    %v1449 = vadd.f32 %v1447, %v1448
    %v1450 = vrot.slane %v1449, 1
    %v1451 = vadd.f32 %v1449, %v1450
    %v1452 = vadd.f32 %v1428, %v1430
    %v1453 = vrot.slane %v1452, 4
    %v1454 = vadd.f32 %v1452, %v1453
    %v1455 = vrot.slane %v1454, 2
    %v1456 = vadd.f32 %v1454, %v1455
    %v1457 = vrot.slane %v1456, 1
    %v1458 = vadd.f32 %v1456, %v1457
    %v1463 = vcombine.low %v1437, %v1444
    %v1465 = vunpack.c.l.s4 1983009808
    %v1466 = vunpack.c.0.s8 %v1465
    %v1467 = vlaneseq
    %v1468 = vshrl.u32 %v1467, 7
    %v1469 = vsub.s32 %v1466, %v1468
    %v1470 = vrot.slane %v1463, %v1469
    %v1471 = vcombine.low %v1451, %v1458
    %v1473 = vunpack.c.l.s4 1983009808
    %v1474 = vunpack.c.0.s8 %v1473
    %v1475 = vlaneseq
    %v1476 = vshrl.u32 %v1475, 7
    %v1477 = vsub.s32 %v1474, %v1476
    %v1478 = vrot.slane %v1471, %v1477
    %v1479 = vsel %vm268, %v1470, %v1470
    %v1480 = vsel %vm270, %v1470, %v1479
    %v1481 = vrot.slane %v1478, 7
    %v1482 = vsel %vm273, %v1481, %v1480
    %v1483 = vsel %vm275, %v1481, %v1482
    %v1484 = vsel %vm277, %v1481, %v1483
    %v1485 = vsel %vm279, %v1481, %v1484
    %s1487 = scalar_lea.vmem [#allocation5], 20
    %1488 = vst [vmem:[%s1487] sm:$0xf] %v1485
    %s1489 = sadd.s32 %s283, 6
    %s1490 = smul.u32 %s1489, 2
    %s1491 = sld [smem:[#allocation2 + %s1490]]
    %s1492 = sadd.s32 %s1490, 1
    %s1493 = sld [smem:[#allocation2 + %s1492]]
    %v1494 = vstv %s1491
    %v1495 = vmul.f32 %v1494, %v31
    %v1496 = vstv %s1493
    %v1497 = vmul.f32 %v1496, %v32
    %v1498 = vsub.f32 %v1495, %v1497
    %v1499 = vadd.f32 %v1498, 7.5
    %v1500 = vmul.f32 %v1496, %v31
    %v1501 = vmul.f32 %v1494, %v32
    %v1502 = vadd.f32 %v1500, %v1501
    %v1503 = vadd.f32 %v1502, 7.5
    %v1505 = vlaneseq
    %v1506 = vshrl.u32 %v1505, 7
    %v1507 = vsub.s32 0, %v1506
    %v1508 = vrot.slane %v1499, %v1507
    %v1509 = vlaneseq
    %v1510 = vshrl.u32 %v1509, 7
    %v1511 = vsub.s32 1, %v1510
    %v1512 = vrot.slane %v1499, %v1511
    %v1515 = vsub.f32 %v36, %v1508
    %v1516 = vsub.f32 %v36, %v1512
    %v1517 = vsub.f32 %v37, %v1508
    %v1518 = vsub.f32 %v37, %v1512
    %v1519 = vand.u32 2147483647, %v1515
    %v1520 = vand.u32 2147483647, %v1516
    %v1521 = vand.u32 2147483647, %v1517
    %v1522 = vand.u32 2147483647, %v1518
    %v1523 = vsub.f32 1.0, %v1519
    %v1524 = vsub.f32 1.0, %v1520
    %v1525 = vsub.f32 1.0, %v1521
    %v1526 = vsub.f32 1.0, %v1522
    %v1527 = vmax.f32 %v1523, 0.0
    %v1528 = vmax.f32 %v1524, 0.0
    %v1529 = vmax.f32 %v1525, 0.0
    %v1530 = vmax.f32 %v1526, 0.0
    %v1532 = vlaneseq
    %v1533 = vshrl.u32 %v1532, 7
    %v1534 = vsub.s32 0, %v1533
    %v1535 = vrot.slane %v1503, %v1534
    %v1536 = vlaneseq
    %v1537 = vshrl.u32 %v1536, 7
    %v1538 = vsub.s32 1, %v1537
    %v1539 = vrot.slane %v1503, %v1538
    %v1542 = vsub.f32 %v36, %v1535
    %v1543 = vsub.f32 %v36, %v1539
    %v1544 = vsub.f32 %v37, %v1535
    %v1545 = vsub.f32 %v37, %v1539
    %v1546 = vand.u32 2147483647, %v1542
    %v1547 = vand.u32 2147483647, %v1543
    %v1548 = vand.u32 2147483647, %v1544
    %v1549 = vand.u32 2147483647, %v1545
    %v1550 = vsub.f32 1.0, %v1546
    %v1551 = vsub.f32 1.0, %v1547
    %v1552 = vsub.f32 1.0, %v1548
    %v1553 = vsub.f32 1.0, %v1549
    %v1554 = vmax.f32 %v1550, 0.0
    %v1555 = vmax.f32 %v1551, 0.0
    %v1556 = vmax.f32 %v1552, 0.0
    %v1557 = vmax.f32 %v1553, 0.0
    %s1558 = scalar_lea.vmem %s3, 192
    %v1559 = vld [vmem:[%s1558] sm:$0xff]
    %v1560 = vld [vmem:[%s1558 + $0x8] sm:$0xff]
    %v1561 = vld [vmem:[%s1558 + $0x10] sm:$0xff]
    %v1562 = vld [vmem:[%s1558 + $0x18] sm:$0xff]
    %v1564 = vsel %vm110, %v1559, 0
    %v1567 = vsel %vm110, %v1560, 0
    %v1570 = vsel %vm110, %v1561, 0
    %v1573 = vsel %vm110, %v1562, 0
    %1575 = vmatprep.subr.mxu0 %v1528
    %1576 = vmatpush1.msra.mxu0 %v1527
    %1577 = vmatprep.subr.mxu0 %v1530
    %1578 = vmatpush1.msra.mxu0 %v1529
    %1579 = vmatprep.subr.mxu0 0.0
    %1580 = vmatpush1.msra.mxu0 0.0
    %1581 = vmatprep.subr.mxu0 0.0
    %1582 = vmatpush1.msra.mxu0 0.0
    %1583 = vmatprep.subr.mxu0 0.0
    %1584 = vmatpush1.msra.mxu0 0.0
    %1585 = vmatprep.subr.mxu0 0.0
    %1586 = vmatpush1.msra.mxu0 0.0
    %1587 = vmatprep.subr.mxu0 0.0
    %1588 = vmatpush1.msra.mxu0 0.0
    %1589 = vmatprep.subr.mxu0 0.0
    %1590 = vmatpush1.msra.mxu0 0.0
    %1591 = vmatprep.subr.mxu0 0.0
    %1592 = vmatpush1.msra.mxu0 0.0
    %1593 = vmatprep.subr.mxu0 0.0
    %1594 = vmatpush1.msra.mxu0 0.0
    %1595 = vmatprep.subr.mxu0 0.0
    %1596 = vmatpush1.msra.mxu0 0.0
    %1597 = vmatprep.subr.mxu0 0.0
    %1598 = vmatpush1.msra.mxu0 0.0
    %1599 = vmatprep.subr.mxu0 0.0
    %1600 = vmatpush1.msra.mxu0 0.0
    %1601 = vmatprep.subr.mxu0 0.0
    %1602 = vmatpush1.msra.mxu0 0.0
    %1603 = vmatprep.subr.mxu0 0.0
    %1604 = vmatpush1.msra.mxu0 0.0
    %1605 = vmatprep.subr.mxu0 0.0
    %1606 = vmatpush1.msra.mxu0 0.0
    %1607 = vmatprep.subr.mxu0 0.0
    %1608 = vmatpush1.msra.mxu0 0.0
    %1609 = vmatprep.subr.mxu0 0.0
    %1610 = vmatpush1.msra.mxu0 0.0
    %1611 = vmatprep.subr.mxu0 0.0
    %1612 = vmatpush1.msra.mxu0 0.0
    %1613 = vmatprep.subr.mxu0 0.0
    %1614 = vmatpush1.msra.mxu0 0.0
    %1615 = vmatprep.subr.mxu0 0.0
    %1616 = vmatpush1.msra.mxu0 0.0
    %1617 = vmatprep.subr.mxu0 0.0
    %1618 = vmatpush1.msra.mxu0 0.0
    %1619 = vmatprep.subr.mxu0 0.0
    %1620 = vmatpush1.msra.mxu0 0.0
    %1621 = vmatprep.subr.mxu0 0.0
    %1622 = vmatpush1.msra.mxu0 0.0
    %1623 = vmatprep.subr.mxu0 0.0
    %1624 = vmatpush1.msra.mxu0 0.0
    %1625 = vmatprep.subr.mxu0 0.0
    %1626 = vmatpush1.msra.mxu0 0.0
    %1627 = vmatprep.subr.mxu0 0.0
    %1628 = vmatpush1.msra.mxu0 0.0
    %1629 = vmatprep.subr.mxu0 0.0
    %1630 = vmatpush1.msra.mxu0 0.0
    %1631 = vmatprep.subr.mxu0 0.0
    %1632 = vmatpush1.msra.mxu0 0.0
    %1633 = vmatprep.subr.mxu0 0.0
    %1634 = vmatpush1.msra.mxu0 0.0
    %1635 = vmatprep.subr.mxu0 0.0
    %1636 = vmatpush1.msra.mxu0 0.0
    %1637 = vmatprep.subr.mxu0 0.0
    %1638 = vmatpush1.msra.mxu0 0.0
    %1639 = vmatprep.mubr.f32.mxu0 0.0
    %1640 = vmatmul.mubr.f32.gmra.mrb[0].mxu0 %v1564
    %v1641 = vpop.f32.mrb[0].mxu0
    %v1642 = vadd.f32 0.0, %v1641
    %v1643 = vpop.f32.mrb[0].mxu0
    %v1644 = vadd.f32 0.0, %v1643
    %1645 = vmatprep.mubr.f32.mxu0 0.0
    %1646 = vmatmul.mubr.f32.gmra.mrb[0].mxu0 %v1567
    %v1647 = vpop.f32.mrb[0].mxu0
    %v1648 = vadd.f32 0.0, %v1647
    %v1649 = vpop.f32.mrb[0].mxu0
    %v1650 = vadd.f32 0.0, %v1649
    %1651 = vmatprep.mubr.f32.mxu0 0.0
    %1652 = vmatmul.mubr.f32.gmra.mrb[0].mxu0 %v1570
    %v1653 = vpop.f32.mrb[0].mxu0
    %v1654 = vadd.f32 0.0, %v1653
    %v1655 = vpop.f32.mrb[0].mxu0
    %v1656 = vadd.f32 0.0, %v1655
    %1657 = vmatprep.mubr.f32.mxu0 0.0
    %1658 = vmatmul.mubr.f32.gmra.mrb[0].mxu0 %v1573
    %v1659 = vpop.f32.mrb[0].mxu0
    %v1660 = vadd.f32 0.0, %v1659
    %v1661 = vpop.f32.mrb[0].mxu0
    %v1662 = vadd.f32 0.0, %v1661
    %1663 = vdwg.mxu0
    %v1664 = vmul.f32 %v1642, %v1554
    %v1665 = vmul.f32 %v1644, %v1555
    %v1666 = vmul.f32 %v1648, %v1556
    %v1667 = vmul.f32 %v1650, %v1557
    %v1668 = vmul.f32 %v1654, %v1554
    %v1669 = vmul.f32 %v1656, %v1555
    %v1670 = vmul.f32 %v1660, %v1556
    %v1671 = vmul.f32 %v1662, %v1557
    %v1672 = vadd.f32 %v1664, %v1666
    %v1673 = vrot.slane %v1672, 4
    %v1674 = vadd.f32 %v1672, %v1673
    %v1675 = vrot.slane %v1674, 2
    %v1676 = vadd.f32 %v1674, %v1675
    %v1677 = vrot.slane %v1676, 1
    %v1678 = vadd.f32 %v1676, %v1677
    %v1679 = vadd.f32 %v1665, %v1667
    %v1680 = vrot.slane %v1679, 4
    %v1681 = vadd.f32 %v1679, %v1680
    %v1682 = vrot.slane %v1681, 2
    %v1683 = vadd.f32 %v1681, %v1682
    %v1684 = vrot.slane %v1683, 1
    %v1685 = vadd.f32 %v1683, %v1684
    %v1686 = vadd.f32 %v1668, %v1670
    %v1687 = vrot.slane %v1686, 4
    %v1688 = vadd.f32 %v1686, %v1687
    %v1689 = vrot.slane %v1688, 2
    %v1690 = vadd.f32 %v1688, %v1689
    %v1691 = vrot.slane %v1690, 1
    %v1692 = vadd.f32 %v1690, %v1691
    %v1693 = vadd.f32 %v1669, %v1671
    %v1694 = vrot.slane %v1693, 4
    %v1695 = vadd.f32 %v1693, %v1694
    %v1696 = vrot.slane %v1695, 2
    %v1697 = vadd.f32 %v1695, %v1696
    %v1698 = vrot.slane %v1697, 1
    %v1699 = vadd.f32 %v1697, %v1698
    %v1704 = vcombine.low %v1678, %v1685
    %v1706 = vunpack.c.l.s4 1983009808
    %v1707 = vunpack.c.0.s8 %v1706
    %v1708 = vlaneseq
    %v1709 = vshrl.u32 %v1708, 7
    %v1710 = vsub.s32 %v1707, %v1709
    %v1711 = vrot.slane %v1704, %v1710
    %v1712 = vcombine.low %v1692, %v1699
    %v1714 = vunpack.c.l.s4 1983009808
    %v1715 = vunpack.c.0.s8 %v1714
    %v1716 = vlaneseq
    %v1717 = vshrl.u32 %v1716, 7
    %v1718 = vsub.s32 %v1715, %v1717
    %v1719 = vrot.slane %v1712, %v1718
    %v1720 = vsel %vm268, %v1711, %v1711
    %v1721 = vsel %vm270, %v1711, %v1720
    %v1722 = vrot.slane %v1719, 7
    %v1723 = vsel %vm273, %v1722, %v1721
    %v1724 = vsel %vm275, %v1722, %v1723
    %v1725 = vsel %vm277, %v1722, %v1724
    %v1726 = vsel %vm279, %v1722, %v1725
    %s1728 = scalar_lea.vmem [#allocation5], 24
    %1729 = vst [vmem:[%s1728] sm:$0xf] %v1726
    %s1730 = sadd.s32 %s283, 7
    %s1731 = smul.u32 %s1730, 2
    %s1732 = sld [smem:[#allocation2 + %s1731]]
    %s1733 = sadd.s32 %s1731, 1
    %s1734 = sld [smem:[#allocation2 + %s1733]]
    %v1735 = vstv %s1732
    %v1736 = vmul.f32 %v1735, %v31
    %v1737 = vstv %s1734
    %v1738 = vmul.f32 %v1737, %v32
    %v1739 = vsub.f32 %v1736, %v1738
    %v1740 = vadd.f32 %v1739, 7.5
    %v1741 = vmul.f32 %v1737, %v31
    %v1742 = vmul.f32 %v1735, %v32
    %v1743 = vadd.f32 %v1741, %v1742
    %v1744 = vadd.f32 %v1743, 7.5
    %v1746 = vlaneseq
    %v1747 = vshrl.u32 %v1746, 7
    %v1748 = vsub.s32 0, %v1747
    %v1749 = vrot.slane %v1740, %v1748
    %v1750 = vlaneseq
    %v1751 = vshrl.u32 %v1750, 7
    %v1752 = vsub.s32 1, %v1751
    %v1753 = vrot.slane %v1740, %v1752
    %v1756 = vsub.f32 %v36, %v1749
    %v1757 = vsub.f32 %v36, %v1753
    %v1758 = vsub.f32 %v37, %v1749
    %v1759 = vsub.f32 %v37, %v1753
    %v1760 = vand.u32 2147483647, %v1756
    %v1761 = vand.u32 2147483647, %v1757
    %v1762 = vand.u32 2147483647, %v1758
    %v1763 = vand.u32 2147483647, %v1759
    %v1764 = vsub.f32 1.0, %v1760
    %v1765 = vsub.f32 1.0, %v1761
    %v1766 = vsub.f32 1.0, %v1762
    %v1767 = vsub.f32 1.0, %v1763
    %v1768 = vmax.f32 %v1764, 0.0
    %v1769 = vmax.f32 %v1765, 0.0
    %v1770 = vmax.f32 %v1766, 0.0
    %v1771 = vmax.f32 %v1767, 0.0
    %v1773 = vlaneseq
    %v1774 = vshrl.u32 %v1773, 7
    %v1775 = vsub.s32 0, %v1774
    %v1776 = vrot.slane %v1744, %v1775
    %v1777 = vlaneseq
    %v1778 = vshrl.u32 %v1777, 7
    %v1779 = vsub.s32 1, %v1778
    %v1780 = vrot.slane %v1744, %v1779
    %v1783 = vsub.f32 %v36, %v1776
    %v1784 = vsub.f32 %v36, %v1780
    %v1785 = vsub.f32 %v37, %v1776
    %v1786 = vsub.f32 %v37, %v1780
    %v1787 = vand.u32 2147483647, %v1783
    %v1788 = vand.u32 2147483647, %v1784
    %v1789 = vand.u32 2147483647, %v1785
    %v1790 = vand.u32 2147483647, %v1786
    %v1791 = vsub.f32 1.0, %v1787
    %v1792 = vsub.f32 1.0, %v1788
    %v1793 = vsub.f32 1.0, %v1789
    %v1794 = vsub.f32 1.0, %v1790
    %v1795 = vmax.f32 %v1791, 0.0
    %v1796 = vmax.f32 %v1792, 0.0
    %v1797 = vmax.f32 %v1793, 0.0
    %v1798 = vmax.f32 %v1794, 0.0
    %s1799 = scalar_lea.vmem %s3, 224
    %v1800 = vld [vmem:[%s1799] sm:$0xff]
    %v1801 = vld [vmem:[%s1799 + $0x8] sm:$0xff]
    %v1802 = vld [vmem:[%s1799 + $0x10] sm:$0xff]
    %v1803 = vld [vmem:[%s1799 + $0x18] sm:$0xff]
    %v1805 = vsel %vm110, %v1800, 0
    %v1808 = vsel %vm110, %v1801, 0
    %v1811 = vsel %vm110, %v1802, 0
    %v1814 = vsel %vm110, %v1803, 0
    %1816 = vmatprep.subr.mxu0 %v1769
    %1817 = vmatpush1.msra.mxu0 %v1768
    %1818 = vmatprep.subr.mxu0 %v1771
    %1819 = vmatpush1.msra.mxu0 %v1770
    %1820 = vmatprep.subr.mxu0 0.0
    %1821 = vmatpush1.msra.mxu0 0.0
    %1822 = vmatprep.subr.mxu0 0.0
    %1823 = vmatpush1.msra.mxu0 0.0
    %1824 = vmatprep.subr.mxu0 0.0
    %1825 = vmatpush1.msra.mxu0 0.0
    %1826 = vmatprep.subr.mxu0 0.0
    %1827 = vmatpush1.msra.mxu0 0.0
    %1828 = vmatprep.subr.mxu0 0.0
    %1829 = vmatpush1.msra.mxu0 0.0
    %1830 = vmatprep.subr.mxu0 0.0
    %1831 = vmatpush1.msra.mxu0 0.0
    %1832 = vmatprep.subr.mxu0 0.0
    %1833 = vmatpush1.msra.mxu0 0.0
    %1834 = vmatprep.subr.mxu0 0.0
    %1835 = vmatpush1.msra.mxu0 0.0
    %1836 = vmatprep.subr.mxu0 0.0
    %1837 = vmatpush1.msra.mxu0 0.0
    %1838 = vmatprep.subr.mxu0 0.0
    %1839 = vmatpush1.msra.mxu0 0.0
    %1840 = vmatprep.subr.mxu0 0.0
    %1841 = vmatpush1.msra.mxu0 0.0
    %1842 = vmatprep.subr.mxu0 0.0
    %1843 = vmatpush1.msra.mxu0 0.0
    %1844 = vmatprep.subr.mxu0 0.0
    %1845 = vmatpush1.msra.mxu0 0.0
    %1846 = vmatprep.subr.mxu0 0.0
    %1847 = vmatpush1.msra.mxu0 0.0
    %1848 = vmatprep.subr.mxu0 0.0
    %1849 = vmatpush1.msra.mxu0 0.0
    %1850 = vmatprep.subr.mxu0 0.0
    %1851 = vmatpush1.msra.mxu0 0.0
    %1852 = vmatprep.subr.mxu0 0.0
    %1853 = vmatpush1.msra.mxu0 0.0
    %1854 = vmatprep.subr.mxu0 0.0
    %1855 = vmatpush1.msra.mxu0 0.0
    %1856 = vmatprep.subr.mxu0 0.0
    %1857 = vmatpush1.msra.mxu0 0.0
    %1858 = vmatprep.subr.mxu0 0.0
    %1859 = vmatpush1.msra.mxu0 0.0
    %1860 = vmatprep.subr.mxu0 0.0
    %1861 = vmatpush1.msra.mxu0 0.0
    %1862 = vmatprep.subr.mxu0 0.0
    %1863 = vmatpush1.msra.mxu0 0.0
    %1864 = vmatprep.subr.mxu0 0.0
    %1865 = vmatpush1.msra.mxu0 0.0
    %1866 = vmatprep.subr.mxu0 0.0
    %1867 = vmatpush1.msra.mxu0 0.0
    %1868 = vmatprep.subr.mxu0 0.0
    %1869 = vmatpush1.msra.mxu0 0.0
    %1870 = vmatprep.subr.mxu0 0.0
    %1871 = vmatpush1.msra.mxu0 0.0
    %1872 = vmatprep.subr.mxu0 0.0
    %1873 = vmatpush1.msra.mxu0 0.0
    %1874 = vmatprep.subr.mxu0 0.0
    %1875 = vmatpush1.msra.mxu0 0.0
    %1876 = vmatprep.subr.mxu0 0.0
    %1877 = vmatpush1.msra.mxu0 0.0
    %1878 = vmatprep.subr.mxu0 0.0
    %1879 = vmatpush1.msra.mxu0 0.0
    %1880 = vmatprep.mubr.f32.mxu0 0.0
    %1881 = vmatmul.mubr.f32.gmra.mrb[0].mxu0 %v1805
    %v1882 = vpop.f32.mrb[0].mxu0
    %v1883 = vadd.f32 0.0, %v1882
    %v1884 = vpop.f32.mrb[0].mxu0
    %v1885 = vadd.f32 0.0, %v1884
    %1886 = vmatprep.mubr.f32.mxu0 0.0
    %1887 = vmatmul.mubr.f32.gmra.mrb[0].mxu0 %v1808
    %v1888 = vpop.f32.mrb[0].mxu0
    %v1889 = vadd.f32 0.0, %v1888
    %v1890 = vpop.f32.mrb[0].mxu0
    %v1891 = vadd.f32 0.0, %v1890
    %1892 = vmatprep.mubr.f32.mxu0 0.0
    %1893 = vmatmul.mubr.f32.gmra.mrb[0].mxu0 %v1811
    %v1894 = vpop.f32.mrb[0].mxu0
    %v1895 = vadd.f32 0.0, %v1894
    %v1896 = vpop.f32.mrb[0].mxu0
    %v1897 = vadd.f32 0.0, %v1896
    %1898 = vmatprep.mubr.f32.mxu0 0.0
    %1899 = vmatmul.mubr.f32.gmra.mrb[0].mxu0 %v1814
    %v1900 = vpop.f32.mrb[0].mxu0
    %v1901 = vadd.f32 0.0, %v1900
    %v1902 = vpop.f32.mrb[0].mxu0
    %v1903 = vadd.f32 0.0, %v1902
    %1904 = vdwg.mxu0
    %v1905 = vmul.f32 %v1883, %v1795
    %v1906 = vmul.f32 %v1885, %v1796
    %v1907 = vmul.f32 %v1889, %v1797
    %v1908 = vmul.f32 %v1891, %v1798
    %v1909 = vmul.f32 %v1895, %v1795
    %v1910 = vmul.f32 %v1897, %v1796
    %v1911 = vmul.f32 %v1901, %v1797
    %v1912 = vmul.f32 %v1903, %v1798
    %v1913 = vadd.f32 %v1905, %v1907
    %v1914 = vrot.slane %v1913, 4
    %v1915 = vadd.f32 %v1913, %v1914
    %v1916 = vrot.slane %v1915, 2
    %v1917 = vadd.f32 %v1915, %v1916
    %v1918 = vrot.slane %v1917, 1
    %v1919 = vadd.f32 %v1917, %v1918
    %v1920 = vadd.f32 %v1906, %v1908
    %v1921 = vrot.slane %v1920, 4
    %v1922 = vadd.f32 %v1920, %v1921
    %v1923 = vrot.slane %v1922, 2
    %v1924 = vadd.f32 %v1922, %v1923
    %v1925 = vrot.slane %v1924, 1
    %v1926 = vadd.f32 %v1924, %v1925
    %v1927 = vadd.f32 %v1909, %v1911
    %v1928 = vrot.slane %v1927, 4
    %v1929 = vadd.f32 %v1927, %v1928
    %v1930 = vrot.slane %v1929, 2
    %v1931 = vadd.f32 %v1929, %v1930
    %v1932 = vrot.slane %v1931, 1
    %v1933 = vadd.f32 %v1931, %v1932
    %v1934 = vadd.f32 %v1910, %v1912
    %v1935 = vrot.slane %v1934, 4
    %v1936 = vadd.f32 %v1934, %v1935
    %v1937 = vrot.slane %v1936, 2
    %v1938 = vadd.f32 %v1936, %v1937
    %v1939 = vrot.slane %v1938, 1
    %v1940 = vadd.f32 %v1938, %v1939
    %v1945 = vcombine.low %v1919, %v1926
    %v1947 = vunpack.c.l.s4 1983009808
    %v1948 = vunpack.c.0.s8 %v1947
    %v1949 = vlaneseq
    %v1950 = vshrl.u32 %v1949, 7
    %v1951 = vsub.s32 %v1948, %v1950
    %v1952 = vrot.slane %v1945, %v1951
    %v1953 = vcombine.low %v1933, %v1940
    %v1955 = vunpack.c.l.s4 1983009808
    %v1956 = vunpack.c.0.s8 %v1955
    %v1957 = vlaneseq
    %v1958 = vshrl.u32 %v1957, 7
    %v1959 = vsub.s32 %v1956, %v1958
    %v1960 = vrot.slane %v1953, %v1959
    %v1961 = vsel %vm268, %v1952, %v1952
    %v1962 = vsel %vm270, %v1952, %v1961
    %v1963 = vrot.slane %v1960, 7
    %v1964 = vsel %vm273, %v1963, %v1962
    %v1965 = vsel %vm275, %v1963, %v1964
    %v1966 = vsel %vm277, %v1963, %v1965
    %v1967 = vsel %vm279, %v1963, %v1966
    %s1969 = scalar_lea.vmem [#allocation5], 28
    %1970 = vst [vmem:[%s1969] sm:$0xf] %v1967
    // Predicated region
    $region22: #{tpu_custom_call.1} parent=1 // pred_check
      _
    $region23: #{tpu_custom_call.1} parent=1 // pred_check_branch
      %1972 = sbr.rel (0) target = $region25
    $region24: #{tpu_custom_call.1} parent=1 // pred_region
      %s1974 = ssub.s32 512, 512
      %1975 = vsyncadd [#allocation3], %s1974
      %s1976 = sshll.u32 [#allocation5], 4
      %s1977 = int_to_ptr.vmem [resolvable:$true] %s1976
      %1982 = dma.vmem_to_hbm [thread:$0]  %s1977, 512, %s4, [#allocation3], 64, 64, 4
    $region25: #{tpu_custom_call.1} parent=1 // pred_fallthru
      _
    // Predicated region
    $region26: #{tpu_custom_call.1} parent=1 // pred_check
      _
    $region27: #{tpu_custom_call.1} parent=1 // pred_check_branch
      %1984 = sbr.rel (0) target = $region29
    $region28: #{tpu_custom_call.1} parent=1 // pred_region
      %1985 = dma.done [#allocation3], 512
    $region29: #{tpu_custom_call.1} parent=1 // pred_fallthru
      _
    %1986 = vsyncpa [#allocation3], 1
    %1987 = vsyncpa [#allocation4], 1

</llo_original>
